<compile_context>
chip_gen: v7x
topology: tpu7x:2x2x1
jax: 0.10.0
libtpu: 0.0.40
codegen_flags: <defaults>
</compile_context>

<pallas_src>
import functools

import jax
import jax.numpy as jnp
from jax import lax
from jax.experimental import pallas as pl
from jax.experimental.pallas import tpu as pltpu

PAD = 128          # lane-dense padding for every feature / hidden / class dim
_NEG = -1e30       # large-negative finite mask value (exact for real activations)


def _round_up(x, m):
    return (x + m - 1) // m * m


# --------------------------------------------------------------------------- #
# Kernel
# --------------------------------------------------------------------------- #
def _gcn_net_kernel(cnt_ref,                       # SMEM scalar prefetch: (B,) int32 node counts
                    a_hbm, x_ref, b_ref, w_hbm,    # inputs
                    o_ref,                          # output (bpad, PAD) f32
                    a_vmem, w_vmem, dma_sems,       # scratch
                    *, num_graphs, num_classes, max_nodes):
    f32 = jnp.float32
    bf16 = jnp.bfloat16

    # grid=(1,): nothing to pipeline -> single-buffered manual staging of the two
    # large operands instead of the default double-buffered BlockSpec pipeline.
    cp_a = pltpu.make_async_copy(a_hbm, a_vmem, dma_sems.at[0])
    cp_w = pltpu.make_async_copy(w_hbm, w_vmem, dma_sems.at[1])
    cp_a.start()
    cp_w.start()
    cp_a.wait()
    cp_w.wait()

    a = a_vmem[...]                                 # (NL, NL) bf16, normalized adjacency

    def conv(h_bf, wi, bi):
        # GCNConv: relu(A_hat @ (H @ W) + b). bf16 MXU inputs, f32 accumulate,
        # bias/relu in f32 on the VPU.
        # TODO(synk): at real N this A_hat @ (.) propagation becomes a row x K
        # BlockSpec grid ("parallel" rows, "arbitrary" K, f32 acc scratch) and
        # ultimately a sparse/padded-neighbor gather — dense A is O(N^2).
        xw = jnp.dot(h_bf, w_vmem[wi], preferred_element_type=f32)
        ah = jnp.dot(a, xw.astype(bf16), preferred_element_type=f32)
        return jnp.maximum(ah + b_ref[bi:bi + 1, :], 0.0)

    h = conv(x_ref[...], 0, 0)
    h = conv(h.astype(bf16), 1, 1)
    h = conv(h.astype(bf16), 2, 2)                  # (NL, PAD) f32

    # --- global max pool + global mean pool --------------------------------
    # Graph g owns the contiguous, sublane-aligned row block
    # [g*max_nodes, g*max_nodes + cnt_g); rows past cnt_g are padding and are
    # masked explicitly, so this is exact independent of the sign of h.
    bpad = o_ref.shape[0]
    gmax_rows, gmean_rows = [], []
    for g in range(num_graphs):                     # static unroll, B is small
        rows = h[g * max_nodes:(g + 1) * max_nodes, :]          # (max_nodes, PAD)
        cnt = cnt_ref[g]
        valid = lax.broadcasted_iota(jnp.int32, rows.shape, 0) < cnt
        gmax_rows.append(
            jnp.max(jnp.where(valid, rows, _NEG), axis=0, keepdims=True))
        inv_cnt = 1.0 / jnp.maximum(cnt.astype(f32), 1.0)
        gmean_rows.append(
            jnp.sum(jnp.where(valid, rows, 0.0), axis=0, keepdims=True) * inv_cnt)
    if bpad > num_graphs:                           # pad pooled rows to a full sublane tile
        zpad = jnp.zeros((bpad - num_graphs, PAD), f32)
        gmax_rows.append(zpad)
        gmean_rows.append(zpad)
    gmax = jnp.concatenate(gmax_rows, axis=0)       # (bpad, PAD) f32
    gmean = jnp.concatenate(gmean_rows, axis=0)     # (bpad, PAD) f32

    # --- lin1 (cat([gmp, gap]) folded into split weight halves) -> relu -----
    z = (jnp.dot(gmax.astype(bf16), w_vmem[3], preferred_element_type=f32)
         + jnp.dot(gmean.astype(bf16), w_vmem[4], preferred_element_type=f32)
         + b_ref[3:4, :])
    z = jnp.maximum(z, 0.0)
    # TODO(synk): training-mode dropout (pltpu.prng_seed + prng_random_bits)
    # omitted; inference mode (identity) implemented here.
    z = jnp.maximum(jnp.dot(z.astype(bf16), w_vmem[5], preferred_element_type=f32)
                    + b_ref[4:5, :], 0.0)
    logits = (jnp.dot(z.astype(bf16), w_vmem[6], preferred_element_type=f32)
              + b_ref[5:6, :])

    # --- log_softmax over the real classes (padded lanes masked out, f32) ---
    lane = lax.broadcasted_iota(jnp.int32, logits.shape, 1)
    logits = jnp.where(lane < num_classes, logits, _NEG)
    s = logits - jnp.max(logits, axis=-1, keepdims=True)
    lse = jnp.log(jnp.sum(jnp.exp(s), axis=-1, keepdims=True))
    o_ref[...] = s - lse                            # (bpad, PAD) unmasked full-tile store


# --------------------------------------------------------------------------- #
# Wrapper / packing
# --------------------------------------------------------------------------- #
def _pad2(w):
    out = jnp.zeros((PAD, PAD), jnp.float32)
    return out.at[:w.shape[0], :w.shape[1]].set(w.astype(jnp.float32))


def pack_weights(params, nhid):
    """Pack 13 weight/bias tensors into one bf16 (7,128,128) slab + one f32
    (8,128) bias slab.  Call ONCE at init — not in the per-forward path."""
    lw1 = params["lw1"]
    wstack = jnp.stack([
        _pad2(params["w1"]), _pad2(params["w2"]), _pad2(params["w3"]),
        _pad2(lw1[:nhid]), _pad2(lw1[nhid:]),       # lin1 split: gmax / gmean halves
        _pad2(params["lw2"]), _pad2(params["lw3"]),
    ]).astype(jnp.bfloat16)                         # bf16 MXU inputs (halves DMA bytes)
    bstack = jnp.zeros((8, PAD), jnp.float32)       # biases stay f32 (VPU math)
    for i, k in enumerate(("b1", "b2", "b3", "lb1", "lb2", "lb3")):
        v = params[k].reshape(-1).astype(jnp.float32)
        bstack = bstack.at[i, :v.shape[0]].set(v)
    return wstack, bstack


@functools.partial(jax.jit,
                   static_argnames=("num_graphs", "num_classes", "max_nodes"))
def gcn_net_forward(a_hat, x, batch, wstack, bstack, *,
                    num_graphs, num_classes, max_nodes):
    """Jitted forward.  `batch` must be sorted (PyG Batch objects always are)."""
    n, num_features = x.shape
    maxn = _round_up(max_nodes, 8)                  # sublane-aligned per-graph slot
    nl = _round_up(num_graphs * maxn, 128)          # lane/sublane-dense node layout
    bpad = max(8, _round_up(num_graphs, 8))         # full-sublane output tile

    # Contiguous per-graph node layout: graph g owns rows [g*maxn, g*maxn+cnt_g).
    one_hot = (batch[None, :] == jnp.arange(num_graphs, dtype=batch.dtype)[:, None])
    counts = jnp.sum(one_hot, axis=1).astype(jnp.int32)                    # (B,)
    starts = jnp.concatenate([jnp.zeros((1,), jnp.int32),
                              jnp.cumsum(counts)[:-1].astype(jnp.int32)])
    new_rows = (batch.astype(jnp.int32) * maxn
                + (jnp.arange(n, dtype=jnp.int32) - starts[batch]))

    x_pad = jnp.zeros((n, PAD), jnp.float32).at[:, :num_features].set(
        x.astype(jnp.float32))
    x_l = jnp.zeros((nl, PAD), jnp.float32).at[new_rows, :].set(x_pad)
    x_l = x_l.astype(jnp.bfloat16)
    a_l = jnp.zeros((nl, nl), jnp.float32).at[
        new_rows[:, None], new_rows[None, :]].set(a_hat.astype(jnp.float32))
    a_l = a_l.astype(jnp.bfloat16)

    kernel = functools.partial(_gcn_net_kernel, num_graphs=num_graphs,
                               num_classes=num_classes, max_nodes=maxn)

    flops = 3 * (2 * nl * PAD * PAD + 2 * nl * nl * PAD) + 4 * (2 * bpad * PAD * PAD)
    bytes_accessed = (nl * nl * 2 + nl * PAD * 2 + 7 * PAD * PAD * 2
                      + 8 * PAD * 4 + bpad * PAD * 4 + num_graphs * 4)

    out = pl.pallas_call(
        kernel,
        out_shape=jax.ShapeDtypeStruct((bpad, PAD), jnp.float32),
        grid_spec=pltpu.PrefetchScalarGridSpec(
            num_scalar_prefetch=1,                  # per-graph node counts -> SMEM
            grid=(1,),
            in_specs=[
                pl.BlockSpec(memory_space=pl.ANY),              # a_l   (manual single-buffer copy)
                pl.BlockSpec((nl, PAD), lambda i, cnt: (0, 0)),  # x_l
                pl.BlockSpec((8, PAD), lambda i, cnt: (0, 0)),   # bstack
                pl.BlockSpec(memory_space=pl.ANY),              # wstack (manual single-buffer copy)
            ],
            out_specs=pl.BlockSpec((bpad, PAD), lambda i, cnt: (0, 0)),
            scratch_shapes=[
                pltpu.VMEM((nl, nl), jnp.bfloat16),     # adjacency, single-buffered
                pltpu.VMEM((7, PAD, PAD), jnp.bfloat16),  # weight slab, single-buffered
                pltpu.SemaphoreType.DMA((2,)),
            ]),
        compiler_params=pltpu.CompilerParams(
            dimension_semantics=("arbitrary",),
            # TODO(synk): when scaling N, raise scoped VMEM on v5e/v6e, e.g.
            # vmem_limit_bytes=100 << 20, and grid-tile A_hat @ H instead of
            # holding dense A resident (hard cap ~2K nodes on v7x's 64 MiB).
        ),
        cost_estimate=pl.CostEstimate(flops=flops,
                                      transcendentals=bpad * (PAD + 1),
                                      bytes_accessed=bytes_accessed),
    )(counts, a_l, x_l, bstack, wstack)
    return out[:num_graphs, :num_classes]


# --------------------------------------------------------------------------- #
# Glue + reference
# --------------------------------------------------------------------------- #
def build_normalized_adj(edge_index, num_nodes):
    """Dense A_hat = D^-1/2 (A + I) D^-1/2 from edge_index [2, E]."""
    src, dst = edge_index[0], edge_index[1]
    a = jnp.zeros((num_nodes, num_nodes), jnp.float32)
    a = a.at[dst, src].add(1.0)          # message src -> dst
    a = a + jnp.eye(num_nodes, dtype=jnp.float32)
    deg = jnp.sum(a, axis=1)
    dinv = 1.0 / jnp.sqrt(deg)
    return dinv[:, None] * a * dinv[None, :]


def _reference(a_hat, x, params, batch, num_graphs, nhid):
    """Pure-JAX f32 reference of the PyTorch forward (eval mode)."""
    dot = functools.partial(jnp.dot, precision=lax.Precision.HIGHEST)

    def conv(h, w, b):
        return jnp.maximum(dot(a_hat, dot(h, w)) + b.reshape(1, -1), 0.0)

    h = conv(x, params["w1"], params["b1"])
    h = conv(h, params["w2"], params["b2"])
    h = conv(h, params["w3"], params["b3"])
    m = (batch[None, :] == jnp.arange(num_graphs, dtype=batch.dtype)[:, None]
         ).astype(jnp.float32)
    cnt = jnp.maximum(jnp.sum(m, axis=1, keepdims=True), 1.0)
    masked = jnp.where(m[:, :, None] > 0.5, h[None, :, :], -jnp.inf)
    gmax = jnp.max(masked, axis=1)
    gmean = dot(m, h) / cnt
    z = jnp.concatenate([gmax, gmean], axis=1)
    z = jnp.maximum(dot(z, params["lw1"]) + params["lb1"].reshape(1, -1), 0.0)
    z = jnp.maximum(dot(z, params["lw2"]) + params["lb2"].reshape(1, -1), 0.0)
    logits = dot(z, params["lw3"]) + params["lb3"].reshape(1, -1)
    return jax.nn.log_softmax(logits, axis=-1)


if __name__ == "__main__":
    # --- hyperparameters implied by the module (small test shapes) ----------
    num_features = 16
    nhid = 32
    num_classes = 4
    B = 2                       # number of graphs
    nodes_per_graph = 8
    N = B * nodes_per_graph     # 16 nodes total

    key = jax.random.PRNGKey(0)
    keys = jax.random.split(key, 10)

    # --- deterministic graph: a directed ring (both directions) per graph ---
    srcs, dsts = [], []
    for g in range(B):
        base = g * nodes_per_graph
        for i in range(nodes_per_graph):
            u = base + i
            v = base + (i + 1) % nodes_per_graph
            srcs += [u, v]
            dsts += [v, u]
    edge_index = jnp.array([srcs, dsts], dtype=jnp.int32)                 # [2, 32]
    batch = jnp.repeat(jnp.arange(B, dtype=jnp.int32), nodes_per_graph)   # [N]
    assert bool(jnp.all(batch[1:] >= batch[:-1])), "batch must be sorted (PyG layout)"

    # --- deterministic inputs / parameters ----------------------------------
    x = jax.random.normal(keys[0], (N, num_features), jnp.float32)

    def w(k, shape, scale=0.1):
        return (scale * jax.random.normal(k, shape)).astype(jnp.float32)

    params = {
        "w1": w(keys[1], (num_features, nhid)),
        "b1": jnp.zeros((1, nhid), jnp.float32),
        "w2": w(keys[2], (nhid, nhid)),
        "b2": jnp.zeros((1, nhid), jnp.float32),
        "w3": w(keys[3], (nhid, nhid)),
        "b3": jnp.zeros((1, nhid), jnp.float32),
        "lw1": w(keys[4], (2 * nhid, nhid)),
        "lb1": w(keys[5], (1, nhid), 0.01),
        "lw2": w(keys[6], (nhid, nhid // 2)),
        "lb2": w(keys[7], (1, nhid // 2), 0.01),
        "lw3": w(keys[8], (nhid // 2, num_classes)),
        "lb3": w(keys[9], (1, num_classes), 0.01),
    }

    # --- one-time packing (hoisted out of the per-forward path) -------------
    wstack, bstack = pack_weights(params, nhid)
    max_nodes = int(jnp.max(jnp.sum(
        (batch[None, :] == jnp.arange(B, dtype=batch.dtype)[:, None]), axis=1)))

    # --- glue: dense normalized adjacency -----------------------------------
    a_hat = build_normalized_adj(edge_index, N)

    out = gcn_net_forward(a_hat, x, batch, wstack, bstack,
                          num_graphs=B, num_classes=num_classes,
                          max_nodes=max_nodes)
    out = jax.block_until_ready(out)

    assert out.shape == (B, num_classes)
    assert bool(jnp.all(jnp.isfinite(out)))
    # log_softmax rows should (approximately) sum to 1 after exp
    assert bool(jnp.allclose(jnp.sum(jnp.exp(out), axis=-1), 1.0, atol=1e-4))
    # match the pure-JAX f32 reference; tolerance relaxed because the kernel
    # feeds bf16 to the MXU (f32 accumulation / f32 VPU math).
    ref = _reference(a_hat, x, params, batch, B, nhid)
    assert bool(jnp.allclose(out, ref, rtol=2e-2, atol=2e-2))
    print("KERNEL_OK")
</pallas_src>

<mosaic_0001>
module attributes {stable_mosaic.version = 11 : i64} {
  func.func @_gcn_net_kernel(%arg0: i32, %arg1: memref<2xi32, #tpu.memory_space<smem>>, %arg2: memref<128x128xbf16, #tpu.memory_space<any>>, %arg3: memref<128x128xbf16, #tpu.memory_space<vmem>>, %arg4: memref<8x128xf32, #tpu.memory_space<vmem>>, %arg5: memref<7x128x128xbf16, #tpu.memory_space<any>>, %arg6: memref<8x128xf32, #tpu.memory_space<vmem>>, %arg7: memref<128x128xbf16, #tpu.memory_space<vmem>>, %arg8: memref<7x128x128xbf16, #tpu.memory_space<vmem>>, %arg9: memref<2x!tpu.dma_semaphore, #tpu.memory_space<semaphore_mem>>) attributes {dimension_semantics = [#tpu.dimension_semantics<arbitrary>], iteration_bounds = array<i64: 1>, scalar_prefetch = 1 : i64, scratch_operands = 3 : i64, tpu.core_type = #tpu.core_type<tc>, window_params = [{}, {pipeline_mode = #tpu.pipeline_mode<synchronous>, transform_indices = @transform_1, window_bounds = array<i64: 128, 128>}, {pipeline_mode = #tpu.pipeline_mode<synchronous>, transform_indices = @transform_2, window_bounds = array<i64: 8, 128>}, {}, {pipeline_mode = #tpu.pipeline_mode<synchronous>, transform_indices = @transform_4, window_bounds = array<i64: 8, 128>}]} {
    %c0_i32 = arith.constant 0 : i32
    %0 = tpu.memref_slice %arg9[%c0_i32] : memref<2x!tpu.dma_semaphore, #tpu.memory_space<semaphore_mem>> -> memref<1x!tpu.dma_semaphore, #tpu.memory_space<semaphore_mem>>
    %1 = tpu.memref_squeeze %0 : memref<1x!tpu.dma_semaphore, #tpu.memory_space<semaphore_mem>> -> memref<!tpu.dma_semaphore, #tpu.memory_space<semaphore_mem>>
    tpu.enqueue_dma source(%arg2 : memref<128x128xbf16, #tpu.memory_space<any>>) target(%arg7 : memref<128x128xbf16, #tpu.memory_space<vmem>>) target_semaphore(%1 : memref<!tpu.dma_semaphore, #tpu.memory_space<semaphore_mem>>)
    %c1_i32 = arith.constant 1 : i32
    %2 = tpu.memref_slice %arg9[%c1_i32] : memref<2x!tpu.dma_semaphore, #tpu.memory_space<semaphore_mem>> -> memref<1x!tpu.dma_semaphore, #tpu.memory_space<semaphore_mem>>
    %3 = tpu.memref_squeeze %2 : memref<1x!tpu.dma_semaphore, #tpu.memory_space<semaphore_mem>> -> memref<!tpu.dma_semaphore, #tpu.memory_space<semaphore_mem>>
    tpu.enqueue_dma source(%arg5 : memref<7x128x128xbf16, #tpu.memory_space<any>>) target(%arg8 : memref<7x128x128xbf16, #tpu.memory_space<vmem>>) target_semaphore(%3 : memref<!tpu.dma_semaphore, #tpu.memory_space<semaphore_mem>>)
    %c0_i32_0 = arith.constant 0 : i32
    %4 = tpu.memref_slice %arg9[%c0_i32_0] : memref<2x!tpu.dma_semaphore, #tpu.memory_space<semaphore_mem>> -> memref<1x!tpu.dma_semaphore, #tpu.memory_space<semaphore_mem>>
    %5 = tpu.memref_squeeze %4 : memref<1x!tpu.dma_semaphore, #tpu.memory_space<semaphore_mem>> -> memref<!tpu.dma_semaphore, #tpu.memory_space<semaphore_mem>>
    tpu.wait_dma2 semaphore(%5 : memref<!tpu.dma_semaphore, #tpu.memory_space<semaphore_mem>>) src(%arg2 : memref<128x128xbf16, #tpu.memory_space<any>>) dst(%arg7 : memref<128x128xbf16, #tpu.memory_space<vmem>>)
    %c1_i32_1 = arith.constant 1 : i32
    %6 = tpu.memref_slice %arg9[%c1_i32_1] : memref<2x!tpu.dma_semaphore, #tpu.memory_space<semaphore_mem>> -> memref<1x!tpu.dma_semaphore, #tpu.memory_space<semaphore_mem>>
    %7 = tpu.memref_squeeze %6 : memref<1x!tpu.dma_semaphore, #tpu.memory_space<semaphore_mem>> -> memref<!tpu.dma_semaphore, #tpu.memory_space<semaphore_mem>>
    tpu.wait_dma2 semaphore(%7 : memref<!tpu.dma_semaphore, #tpu.memory_space<semaphore_mem>>) src(%arg5 : memref<7x128x128xbf16, #tpu.memory_space<any>>) dst(%arg8 : memref<7x128x128xbf16, #tpu.memory_space<vmem>>)
    %c0 = arith.constant 0 : index
    %c0_2 = arith.constant 0 : index
    %8 = vector.load %arg7[%c0, %c0_2] : memref<128x128xbf16, #tpu.memory_space<vmem>>, vector<128x128xbf16>
    %c0_3 = arith.constant 0 : index
    %c0_4 = arith.constant 0 : index
    %9 = vector.load %arg3[%c0_3, %c0_4] : memref<128x128xbf16, #tpu.memory_space<vmem>>, vector<128x128xbf16>
    %c0_5 = arith.constant 0 : index
    %c0_6 = arith.constant 0 : index
    %c0_7 = arith.constant 0 : index
    %10 = vector.load %arg8[%c0_5, %c0_6, %c0_7] : memref<7x128x128xbf16, #tpu.memory_space<vmem>>, vector<1x128x128xbf16>
    %11 = vector.shape_cast %10 : vector<1x128x128xbf16> to vector<128x128xbf16>
    %cst = arith.constant dense<0.000000e+00> : vector<128x128xf32>
    %12 = tpu.matmul %9, %11, %cst {dimension_numbers = #tpu.dot_dimension_numbers<[1], [0], [0], [1], [0, 0, 1, 1], [], []>} : vector<128x128xbf16>, vector<128x128xbf16>, vector<128x128xf32> -> vector<128x128xf32>
    %13 = arith.truncf %12 : vector<128x128xf32> to vector<128x128xbf16>
    %cst_8 = arith.constant dense<0.000000e+00> : vector<128x128xf32>
    %14 = tpu.matmul %8, %13, %cst_8 {dimension_numbers = #tpu.dot_dimension_numbers<[1], [0], [0], [1], [0, 0, 1, 1], [], []>} : vector<128x128xbf16>, vector<128x128xbf16>, vector<128x128xf32> -> vector<128x128xf32>
    %c0_9 = arith.constant 0 : index
    %c0_10 = arith.constant 0 : index
    %15 = vector.load %arg4[%c0_9, %c0_10] : memref<8x128xf32, #tpu.memory_space<vmem>>, vector<1x128xf32>
    %16 = vector.broadcast %15 : vector<1x128xf32> to vector<128x128xf32>
    %17 = arith.addf %14, %16 : vector<128x128xf32>
    %cst_11 = arith.constant 0.000000e+00 : f32
    %18 = vector.broadcast %cst_11 : f32 to vector<128x128xf32>
    %19 = arith.maximumf %17, %18 : vector<128x128xf32>
    %20 = arith.truncf %19 : vector<128x128xf32> to vector<128x128xbf16>
    %c1 = arith.constant 1 : index
    %c0_12 = arith.constant 0 : index
    %c0_13 = arith.constant 0 : index
    %21 = vector.load %arg8[%c1, %c0_12, %c0_13] : memref<7x128x128xbf16, #tpu.memory_space<vmem>>, vector<1x128x128xbf16>
    %22 = vector.shape_cast %21 : vector<1x128x128xbf16> to vector<128x128xbf16>
    %cst_14 = arith.constant dense<0.000000e+00> : vector<128x128xf32>
    %23 = tpu.matmul %20, %22, %cst_14 {dimension_numbers = #tpu.dot_dimension_numbers<[1], [0], [0], [1], [0, 0, 1, 1], [], []>} : vector<128x128xbf16>, vector<128x128xbf16>, vector<128x128xf32> -> vector<128x128xf32>
    %24 = arith.truncf %23 : vector<128x128xf32> to vector<128x128xbf16>
    %cst_15 = arith.constant dense<0.000000e+00> : vector<128x128xf32>
    %25 = tpu.matmul %8, %24, %cst_15 {dimension_numbers = #tpu.dot_dimension_numbers<[1], [0], [0], [1], [0, 0, 1, 1], [], []>} : vector<128x128xbf16>, vector<128x128xbf16>, vector<128x128xf32> -> vector<128x128xf32>
    %c1_16 = arith.constant 1 : index
    %c0_17 = arith.constant 0 : index
    %26 = vector.load %arg4[%c1_16, %c0_17] : memref<8x128xf32, #tpu.memory_space<vmem>>, vector<1x128xf32>
    %27 = vector.broadcast %26 : vector<1x128xf32> to vector<128x128xf32>
    %28 = arith.addf %25, %27 : vector<128x128xf32>
    %cst_18 = arith.constant 0.000000e+00 : f32
    %29 = vector.broadcast %cst_18 : f32 to vector<128x128xf32>
    %30 = arith.maximumf %28, %29 : vector<128x128xf32>
    %31 = arith.truncf %30 : vector<128x128xf32> to vector<128x128xbf16>
    %c2 = arith.constant 2 : index
    %c0_19 = arith.constant 0 : index
    %c0_20 = arith.constant 0 : index
    %32 = vector.load %arg8[%c2, %c0_19, %c0_20] : memref<7x128x128xbf16, #tpu.memory_space<vmem>>, vector<1x128x128xbf16>
    %33 = vector.shape_cast %32 : vector<1x128x128xbf16> to vector<128x128xbf16>
    %cst_21 = arith.constant dense<0.000000e+00> : vector<128x128xf32>
    %34 = tpu.matmul %31, %33, %cst_21 {dimension_numbers = #tpu.dot_dimension_numbers<[1], [0], [0], [1], [0, 0, 1, 1], [], []>} : vector<128x128xbf16>, vector<128x128xbf16>, vector<128x128xf32> -> vector<128x128xf32>
    %35 = arith.truncf %34 : vector<128x128xf32> to vector<128x128xbf16>
    %cst_22 = arith.constant dense<0.000000e+00> : vector<128x128xf32>
    %36 = tpu.matmul %8, %35, %cst_22 {dimension_numbers = #tpu.dot_dimension_numbers<[1], [0], [0], [1], [0, 0, 1, 1], [], []>} : vector<128x128xbf16>, vector<128x128xbf16>, vector<128x128xf32> -> vector<128x128xf32>
    %c2_23 = arith.constant 2 : index
    %c0_24 = arith.constant 0 : index
    %37 = vector.load %arg4[%c2_23, %c0_24] : memref<8x128xf32, #tpu.memory_space<vmem>>, vector<1x128xf32>
    %38 = vector.broadcast %37 : vector<1x128xf32> to vector<128x128xf32>
    %39 = arith.addf %36, %38 : vector<128x128xf32>
    %cst_25 = arith.constant 0.000000e+00 : f32
    %40 = vector.broadcast %cst_25 : f32 to vector<128x128xf32>
    %41 = arith.maximumf %39, %40 : vector<128x128xf32>
    %42 = vector.extract_strided_slice %41 {offsets = [0, 0], sizes = [8, 128], strides = [1, 1]} : vector<128x128xf32> to vector<8x128xf32>
    %c0_26 = arith.constant 0 : index
    %43 = memref.load %arg1[%c0_26] : memref<2xi32, #tpu.memory_space<smem>>
    %44 = tpu.iota {dimensions = array<i32: 0>} : vector<8x128xi32>
    %45 = vector.broadcast %43 : i32 to vector<8x128xi32>
    %46 = arith.cmpi slt, %44, %45 : vector<8x128xi32>
    %cst_27 = arith.constant -1.000000e+30 : f32
    %47 = vector.broadcast %cst_27 : f32 to vector<8x128xf32>
    %48 = arith.select %46, %42, %47 : vector<8x128xi1>, vector<8x128xf32>
    %cst_28 = arith.constant dense<0xFF800000> : vector<128xf32>
    %49 = vector.multi_reduction <maximumf>, %48, %cst_28 [0] : vector<8x128xf32> to vector<128xf32>
    %50 = vector.shape_cast %49 : vector<128xf32> to vector<1x128xf32>
    %51 = arith.sitofp %43 : i32 to f32
    %cst_29 = arith.constant 1.000000e+00 : f32
    %52 = arith.maximumf %51, %cst_29 : f32
    %cst_30 = arith.constant 1.000000e+00 : f32
    %53 = arith.divf %cst_30, %52 : f32
    %cst_31 = arith.constant 0.000000e+00 : f32
    %54 = vector.broadcast %cst_31 : f32 to vector<8x128xf32>
    %55 = arith.select %46, %42, %54 : vector<8x128xi1>, vector<8x128xf32>
    %cst_32 = arith.constant dense<0.000000e+00> : vector<128xf32>
    %56 = vector.multi_reduction <add>, %55, %cst_32 [0] : vector<8x128xf32> to vector<128xf32>
    %57 = vector.shape_cast %56 : vector<128xf32> to vector<1x128xf32>
    %58 = vector.broadcast %53 : f32 to vector<1x128xf32>
    %59 = arith.mulf %57, %58 : vector<1x128xf32>
    %60 = vector.extract_strided_slice %41 {offsets = [8, 0], sizes = [8, 128], strides = [1, 1]} : vector<128x128xf32> to vector<8x128xf32>
    %c1_33 = arith.constant 1 : index
    %61 = memref.load %arg1[%c1_33] : memref<2xi32, #tpu.memory_space<smem>>
    %62 = tpu.iota {dimensions = array<i32: 0>} : vector<8x128xi32>
    %63 = vector.broadcast %61 : i32 to vector<8x128xi32>
    %64 = arith.cmpi slt, %62, %63 : vector<8x128xi32>
    %cst_34 = arith.constant -1.000000e+30 : f32
    %65 = vector.broadcast %cst_34 : f32 to vector<8x128xf32>
    %66 = arith.select %64, %60, %65 : vector<8x128xi1>, vector<8x128xf32>
    %cst_35 = arith.constant dense<0xFF800000> : vector<128xf32>
    %67 = vector.multi_reduction <maximumf>, %66, %cst_35 [0] : vector<8x128xf32> to vector<128xf32>
    %68 = vector.shape_cast %67 : vector<128xf32> to vector<1x128xf32>
    %69 = arith.sitofp %61 : i32 to f32
    %cst_36 = arith.constant 1.000000e+00 : f32
    %70 = arith.maximumf %69, %cst_36 : f32
    %cst_37 = arith.constant 1.000000e+00 : f32
    %71 = arith.divf %cst_37, %70 : f32
    %cst_38 = arith.constant 0.000000e+00 : f32
    %72 = vector.broadcast %cst_38 : f32 to vector<8x128xf32>
    %73 = arith.select %64, %60, %72 : vector<8x128xi1>, vector<8x128xf32>
    %cst_39 = arith.constant dense<0.000000e+00> : vector<128xf32>
    %74 = vector.multi_reduction <add>, %73, %cst_39 [0] : vector<8x128xf32> to vector<128xf32>
    %75 = vector.shape_cast %74 : vector<128xf32> to vector<1x128xf32>
    %76 = vector.broadcast %71 : f32 to vector<1x128xf32>
    %77 = arith.mulf %75, %76 : vector<1x128xf32>
    %cst_40 = arith.constant 0.000000e+00 : f32
    %78 = vector.broadcast %cst_40 : f32 to vector<6x128xf32>
    %79 = tpu.concatenate %50, %68, %78 in 0 : vector<1x128xf32>, vector<1x128xf32>, vector<6x128xf32> -> vector<8x128xf32>
    %80 = tpu.concatenate %59, %77, %78 in 0 : vector<1x128xf32>, vector<1x128xf32>, vector<6x128xf32> -> vector<8x128xf32>
    %81 = arith.truncf %79 : vector<8x128xf32> to vector<8x128xbf16>
    %c3 = arith.constant 3 : index
    %c0_41 = arith.constant 0 : index
    %c0_42 = arith.constant 0 : index
    %82 = vector.load %arg8[%c3, %c0_41, %c0_42] : memref<7x128x128xbf16, #tpu.memory_space<vmem>>, vector<1x128x128xbf16>
    %83 = vector.shape_cast %82 : vector<1x128x128xbf16> to vector<128x128xbf16>
    %cst_43 = arith.constant dense<0.000000e+00> : vector<8x128xf32>
    %84 = tpu.matmul %81, %83, %cst_43 {dimension_numbers = #tpu.dot_dimension_numbers<[1], [0], [0], [1], [0, 0, 1, 1], [], []>} : vector<8x128xbf16>, vector<128x128xbf16>, vector<8x128xf32> -> vector<8x128xf32>
    %85 = arith.truncf %80 : vector<8x128xf32> to vector<8x128xbf16>
    %c4 = arith.constant 4 : index
    %c0_44 = arith.constant 0 : index
    %c0_45 = arith.constant 0 : index
    %86 = vector.load %arg8[%c4, %c0_44, %c0_45] : memref<7x128x128xbf16, #tpu.memory_space<vmem>>, vector<1x128x128xbf16>
    %87 = vector.shape_cast %86 : vector<1x128x128xbf16> to vector<128x128xbf16>
    %cst_46 = arith.constant dense<0.000000e+00> : vector<8x128xf32>
    %88 = tpu.matmul %85, %87, %cst_46 {dimension_numbers = #tpu.dot_dimension_numbers<[1], [0], [0], [1], [0, 0, 1, 1], [], []>} : vector<8x128xbf16>, vector<128x128xbf16>, vector<8x128xf32> -> vector<8x128xf32>
    %89 = arith.addf %84, %88 : vector<8x128xf32>
    %c3_47 = arith.constant 3 : index
    %c0_48 = arith.constant 0 : index
    %90 = vector.load %arg4[%c3_47, %c0_48] : memref<8x128xf32, #tpu.memory_space<vmem>>, vector<1x128xf32>
    %91 = vector.broadcast %90 : vector<1x128xf32> to vector<8x128xf32>
    %92 = arith.addf %89, %91 : vector<8x128xf32>
    %cst_49 = arith.constant 0.000000e+00 : f32
    %93 = vector.broadcast %cst_49 : f32 to vector<8x128xf32>
    %94 = arith.maximumf %92, %93 : vector<8x128xf32>
    %95 = arith.truncf %94 : vector<8x128xf32> to vector<8x128xbf16>
    %c5 = arith.constant 5 : index
    %c0_50 = arith.constant 0 : index
    %c0_51 = arith.constant 0 : index
    %96 = vector.load %arg8[%c5, %c0_50, %c0_51] : memref<7x128x128xbf16, #tpu.memory_space<vmem>>, vector<1x128x128xbf16>
    %97 = vector.shape_cast %96 : vector<1x128x128xbf16> to vector<128x128xbf16>
    %cst_52 = arith.constant dense<0.000000e+00> : vector<8x128xf32>
    %98 = tpu.matmul %95, %97, %cst_52 {dimension_numbers = #tpu.dot_dimension_numbers<[1], [0], [0], [1], [0, 0, 1, 1], [], []>} : vector<8x128xbf16>, vector<128x128xbf16>, vector<8x128xf32> -> vector<8x128xf32>
    %c4_53 = arith.constant 4 : index
    %c0_54 = arith.constant 0 : index
    %99 = vector.load %arg4[%c4_53, %c0_54] : memref<8x128xf32, #tpu.memory_space<vmem>>, vector<1x128xf32>
    %100 = vector.broadcast %99 : vector<1x128xf32> to vector<8x128xf32>
    %101 = arith.addf %98, %100 : vector<8x128xf32>
    %cst_55 = arith.constant 0.000000e+00 : f32
    %102 = vector.broadcast %cst_55 : f32 to vector<8x128xf32>
    %103 = arith.maximumf %101, %102 : vector<8x128xf32>
    %104 = arith.truncf %103 : vector<8x128xf32> to vector<8x128xbf16>
    %c6 = arith.constant 6 : index
    %c0_56 = arith.constant 0 : index
    %c0_57 = arith.constant 0 : index
    %105 = vector.load %arg8[%c6, %c0_56, %c0_57] : memref<7x128x128xbf16, #tpu.memory_space<vmem>>, vector<1x128x128xbf16>
    %106 = vector.shape_cast %105 : vector<1x128x128xbf16> to vector<128x128xbf16>
    %cst_58 = arith.constant dense<0.000000e+00> : vector<8x128xf32>
    %107 = tpu.matmul %104, %106, %cst_58 {dimension_numbers = #tpu.dot_dimension_numbers<[1], [0], [0], [1], [0, 0, 1, 1], [], []>} : vector<8x128xbf16>, vector<128x128xbf16>, vector<8x128xf32> -> vector<8x128xf32>
    %c5_59 = arith.constant 5 : index
    %c0_60 = arith.constant 0 : index
    %108 = vector.load %arg4[%c5_59, %c0_60] : memref<8x128xf32, #tpu.memory_space<vmem>>, vector<1x128xf32>
    %109 = vector.broadcast %108 : vector<1x128xf32> to vector<8x128xf32>
    %110 = arith.addf %107, %109 : vector<8x128xf32>
    %111 = tpu.iota {dimensions = array<i32: 1>} : vector<8x128xi32>
    %c4_i32 = arith.constant 4 : i32
    %112 = vector.broadcast %c4_i32 : i32 to vector<8x128xi32>
    %113 = arith.cmpi slt, %111, %112 : vector<8x128xi32>
    %cst_61 = arith.constant -1.000000e+30 : f32
    %114 = vector.broadcast %cst_61 : f32 to vector<8x128xf32>
    %115 = arith.select %113, %110, %114 : vector<8x128xi1>, vector<8x128xf32>
    %cst_62 = arith.constant dense<0xFF800000> : vector<8xf32>
    %116 = vector.multi_reduction <maximumf>, %115, %cst_62 [1] : vector<8x128xf32> to vector<8xf32>
    %117 = vector.shape_cast %116 : vector<8xf32> to vector<8x1xf32>
    %118 = vector.broadcast %117 : vector<8x1xf32> to vector<8x128xf32>
    %119 = arith.subf %115, %118 : vector<8x128xf32>
    %120 = math.exp %119 : vector<8x128xf32>
    %cst_63 = arith.constant dense<0.000000e+00> : vector<8xf32>
    %121 = vector.multi_reduction <add>, %120, %cst_63 [1] : vector<8x128xf32> to vector<8xf32>
    %122 = vector.shape_cast %121 : vector<8xf32> to vector<8x1xf32>
    %123 = math.log %122 : vector<8x1xf32>
    %124 = vector.broadcast %123 : vector<8x1xf32> to vector<8x128xf32>
    %125 = arith.subf %119, %124 : vector<8x128xf32>
    %c0_64 = arith.constant 0 : index
    %c0_65 = arith.constant 0 : index
    %126 = vector.load %arg6[%c0_64, %c0_65] : memref<8x128xf32, #tpu.memory_space<vmem>>, vector<8x128xf32>
    tpu.vector_store %arg6[%c0_64, %c0_65], %125 {strides = array<i32>} : memref<8x128xf32, #tpu.memory_space<vmem>>, vector<8x128xf32>,
    return
  }
  func.func @transform_1(%arg0: i32, %arg1: memref<2xi32, #tpu.memory_space<smem>>) -> (i32, i32) {
    %c0_i32 = arith.constant 0 : i32
    %c0_i32_0 = arith.constant 0 : i32
    %c0_i32_1 = arith.constant 0 : i32
    return %c0_i32, %c0_i32_0 : i32, i32
  }
  func.func @transform_2(%arg0: i32, %arg1: memref<2xi32, #tpu.memory_space<smem>>) -> (i32, i32) {
    %c0_i32 = arith.constant 0 : i32
    %c0_i32_0 = arith.constant 0 : i32
    %c0_i32_1 = arith.constant 0 : i32
    return %c0_i32, %c0_i32_0 : i32, i32
  }
  func.func @transform_4(%arg0: i32, %arg1: memref<2xi32, #tpu.memory_space<smem>>) -> (i32, i32) {
    %c0_i32 = arith.constant 0 : i32
    %c0_i32_0 = arith.constant 0 : i32
    %c0_i32_1 = arith.constant 0 : i32
    return %c0_i32, %c0_i32_0 : i32, i32
  }
}

</mosaic_0001>

<llo_original>
// kernel: gcn_net_forward.1
$region0: #{gcn_net_forward.1}
  #allocation0 [shape = 'u32[]', space=smem, size = 0x4, offset = 0x4, fixed_abs, tag = 'smem constant byte address 0x4 - core index']
  #allocation1 [shape = 'u32[144,128]{1,0:T(1,128)}', space=vmem, size = 0x12000, scoped, tag = 'internal scratch']
  #allocation2 [shape = 'bf16[128,128]{1,0:T(16,128)(2,1)}', space=vmem, size = 0x8000, scoped, tag = 'scratch operand']
  #allocation3 [shape = 'bf16[7,128,128]{2,1,0:T(16,128)(2,1)}', space=vmem, size = 0x38000, scoped, tag = 'scratch operand']
  #allocation4 [shape = 's32[2]{0}', space=sflag, size = 0x8, scoped, tag = 'scratch operand']
  #allocation5 [shape = 's32[1]{0}', space=sflag, size = 0x4, scoped, tag = 'scoped memory for gcn_net_forward.1']
  #allocation6 [shape = 'u8[512]{0}', space=smem, size = 0x200, scoped, tag = 'prefetched SMEM operand 0']
  #allocation7 [shape = 's32[]', space=sflag, size = 0x4, offset = 0, fixed_abs, tag = 'sflag constant byte address 0x0 - dummy sync flag']
  #allocation8 [shape = 's32[]', space=sflag, size = 0x4, offset = 0, fixed_abs, tag = 'sflag constant byte address 0x0 - dummy sync flag']
  %s0 = inlined_call_operand.vmem [shape: s32[2], index: 0, kind: input, shape index: {}]
  %s1 = inlined_call_operand.vmem [shape: bf16[128,128], index: 1, kind: input, shape index: {}]
  %s2 = inlined_call_operand.vmem [shape: bf16[128,128], index: 2, kind: input, shape index: {}]
  %s3 = inlined_call_operand.vmem [shape: f32[8,128], index: 3, kind: input, shape index: {}]
  %s4 = inlined_call_operand.vmem [shape: bf16[7,128,128], index: 4, kind: input, shape index: {}]
  %s5 = inlined_call_operand.vmem [shape: f32[8,128], index: 5, kind: output, shape index: {}]
  %s6 = sld [smem:[#allocation0]]
  $region86: #{gcn_net_forward.1} parent=0
    _
  %s8 = ssub.s32 1, %s6
  %s9 = scalar_select 0, %s8, %s6
  %s10 = sshll.u32 %s0, 4
  %s11 = int_to_ptr.vmem [resolvable:$true] %s10
  %13 = dma.vmem_to_smem %s11, 16, [#allocation6], [#allocation5]
  %14 = dma.done [#allocation5], 16
  %15 = sfence
  // Predicated region
  $region2: #{gcn_net_forward.1} parent=0 // pred_check
    _
  $region3: #{gcn_net_forward.1} parent=0 // pred_check_branch
    %17 = sbr.rel (0) target = $region5
  $region4: #{gcn_net_forward.1} parent=0 // pred_region
    _
  $region5: #{gcn_net_forward.1} parent=0 // pred_fallthru
    _
  // Predicated region
  $region6: #{gcn_net_forward.1} parent=0 // pred_check
    _
  $region7: #{gcn_net_forward.1} parent=0 // pred_check_branch
    %19 = sbr.rel (0) target = $region9
  $region8: #{gcn_net_forward.1} parent=0 // pred_region
    _
  $region9: #{gcn_net_forward.1} parent=0 // pred_fallthru
    _
  %p22 = scmp.lt.u32.totalorder 64, 8
  %p23 = pneg %p22
  // Predicated region
  $region10: #{gcn_net_forward.1} parent=0 // pred_check
    _
  $region11: #{gcn_net_forward.1} parent=0 // pred_check_branch
    %25 = sbr.rel (%p22) target = $region13
  $region12: #{gcn_net_forward.1} parent=0 // pred_region
    %s40 = sand.u32 64, 7
    %p41 = scmp.eq.s32.totalorder %s40, 0
    // Predicated region
    $region25: #{gcn_net_forward.1} parent=12 // pred_check
      %p42 = pneg %p41
    $region26: #{gcn_net_forward.1} parent=12 // pred_check_branch
      %44 = sbr.rel (%p42) target = $region28
    $region27: #{gcn_net_forward.1} parent=12 // pred_region
      loop: start=0, step=1, limit=1
      $region29: #{gcn_net_forward.1} parent=27 // loop_pre_header
        _
      $region30: #{gcn_net_forward.1} parent=27 // loop_header
        %s46 = sphi 0, %s50
        %p47 = scmp.ge.s32.totalorder %s46, 1
        %s51 = sphi %s1, %s1
        %s52 = sphi [#allocation2], [#allocation2]
      $region31: #{gcn_net_forward.1} parent=27 // loop_header_branch
        %49 = sbr.rel (%p47) target = $region35
      $region32: #{gcn_net_forward.1} parent=27 // loop_body
        %v53 = vld [vmem:[%s51] sm:$0xff]
        %54 = vst [vmem:[%s52] sm:$0xff] %v53
        %v55 = vld [vmem:[%s51 + $0x8] sm:$0xff]
        %56 = vst [vmem:[%s52 + $0x8] sm:$0xff] %v55
        %v57 = vld [vmem:[%s51 + $0x10] sm:$0xff]
        %58 = vst [vmem:[%s52 + $0x10] sm:$0xff] %v57
        %v59 = vld [vmem:[%s51 + $0x18] sm:$0xff]
        %60 = vst [vmem:[%s52 + $0x18] sm:$0xff] %v59
        %v61 = vld [vmem:[%s51 + $0x20] sm:$0xff]
        %62 = vst [vmem:[%s52 + $0x20] sm:$0xff] %v61
        %v63 = vld [vmem:[%s51 + $0x28] sm:$0xff]
        %64 = vst [vmem:[%s52 + $0x28] sm:$0xff] %v63
        %v65 = vld [vmem:[%s51 + $0x30] sm:$0xff]
        %66 = vst [vmem:[%s52 + $0x30] sm:$0xff] %v65
        %v67 = vld [vmem:[%s51 + $0x38] sm:$0xff]
        %68 = vst [vmem:[%s52 + $0x38] sm:$0xff] %v67
      $region33: #{gcn_net_forward.1} parent=27 // loop_footer
        %s50 = sadd.s32 1, %s46
      $region34: #{gcn_net_forward.1} parent=27 // loop_footer_branch
        %45 = sbr.rel target = $region30
      $region35: #{gcn_net_forward.1} parent=27 // loop_exit
        _
    $region28: #{gcn_net_forward.1} parent=12 // pred_fallthru
      _
    %p69 = pneg %p41
    // Predicated region
    $region36: #{gcn_net_forward.1} parent=12 // pred_check
      _
    $region37: #{gcn_net_forward.1} parent=12 // pred_check_branch
      %71 = sbr.rel (%p41) target = $region39
    $region38: #{gcn_net_forward.1} parent=12 // pred_region
      %s72 = sand.u32 64, 7
    $region39: #{gcn_net_forward.1} parent=12 // pred_fallthru
      _
  $region13: #{gcn_net_forward.1} parent=0 // pred_fallthru
    _
  // Predicated region
  $region14: #{gcn_net_forward.1} parent=0 // pred_check
    %p26 = pneg %p22
  $region15: #{gcn_net_forward.1} parent=0 // pred_check_branch
    %28 = sbr.rel (%p26) target = $region17
  $region16: #{gcn_net_forward.1} parent=0 // pred_region
    %s29 = sshllo.u32 0, 64
    loop: start=0, step=1, limit=1
    $region18: #{gcn_net_forward.1} parent=16 // loop_pre_header
      _
    $region19: #{gcn_net_forward.1} parent=16 // loop_header
      %s31 = sphi 0, %s35
      %p32 = scmp.ge.s32.totalorder %s31, 1
      %s36 = sphi %s1, %s1
      %s37 = sphi [#allocation2], [#allocation2]
    $region20: #{gcn_net_forward.1} parent=16 // loop_header_branch
      %34 = sbr.rel (%p32) target = $region24
    $region21: #{gcn_net_forward.1} parent=16 // loop_body
      %v38 = vld [vmem:[%s36] sm:%s29]
      %39 = vst [vmem:[%s37] sm:%s29] %v38
    $region22: #{gcn_net_forward.1} parent=16 // loop_footer
      %s35 = sadd.s32 1, %s31
    $region23: #{gcn_net_forward.1} parent=16 // loop_footer_branch
      %30 = sbr.rel target = $region19
    $region24: #{gcn_net_forward.1} parent=16 // loop_exit
      _
  $region17: #{gcn_net_forward.1} parent=0 // pred_fallthru
    _
  // Predicated region
  $region40: #{gcn_net_forward.1} parent=0 // pred_check
    _
  $region41: #{gcn_net_forward.1} parent=0 // pred_check_branch
    %75 = sbr.rel (0) target = $region43
  $region42: #{gcn_net_forward.1} parent=0 // pred_region
    %76 = vsyncadd [#allocation4], 1024
  $region43: #{gcn_net_forward.1} parent=0 // pred_fallthru
    _
  %s77 = scalar_lea.sflag [#allocation4], 1
  %p79 = scmp.lt.u32.totalorder 448, 8
  %p80 = pneg %p79
  // Predicated region
  $region44: #{gcn_net_forward.1} parent=0 // pred_check
    _
  $region45: #{gcn_net_forward.1} parent=0 // pred_check_branch
    %82 = sbr.rel (%p79) target = $region47
  $region46: #{gcn_net_forward.1} parent=0 // pred_region
    %s97 = sand.u32 448, 7
    %p98 = scmp.eq.s32.totalorder %s97, 0
    // Predicated region
    $region59: #{gcn_net_forward.1} parent=46 // pred_check
      %p99 = pneg %p98
    $region60: #{gcn_net_forward.1} parent=46 // pred_check_branch
      %101 = sbr.rel (%p99) target = $region62
    $region61: #{gcn_net_forward.1} parent=46 // pred_region
      loop: start=0, step=1, limit=1
      $region63: #{gcn_net_forward.1} parent=61 // loop_pre_header
        _
      $region64: #{gcn_net_forward.1} parent=61 // loop_header
        %s103 = sphi 0, %s107
        %p104 = scmp.ge.s32.totalorder %s103, 1
        %s108 = sphi %s4, %s4
        %s109 = sphi [#allocation3], [#allocation3]
      $region65: #{gcn_net_forward.1} parent=61 // loop_header_branch
        %106 = sbr.rel (%p104) target = $region69
      $region66: #{gcn_net_forward.1} parent=61 // loop_body
        %v110 = vld [vmem:[%s108] sm:$0xff]
        %111 = vst [vmem:[%s109] sm:$0xff] %v110
        %v112 = vld [vmem:[%s108 + $0x8] sm:$0xff]
        %113 = vst [vmem:[%s109 + $0x8] sm:$0xff] %v112
        %v114 = vld [vmem:[%s108 + $0x10] sm:$0xff]
        %115 = vst [vmem:[%s109 + $0x10] sm:$0xff] %v114
        %v116 = vld [vmem:[%s108 + $0x18] sm:$0xff]
        %117 = vst [vmem:[%s109 + $0x18] sm:$0xff] %v116
        %v118 = vld [vmem:[%s108 + $0x20] sm:$0xff]
        %119 = vst [vmem:[%s109 + $0x20] sm:$0xff] %v118
        %v120 = vld [vmem:[%s108 + $0x28] sm:$0xff]
        %121 = vst [vmem:[%s109 + $0x28] sm:$0xff] %v120
        %v122 = vld [vmem:[%s108 + $0x30] sm:$0xff]
        %123 = vst [vmem:[%s109 + $0x30] sm:$0xff] %v122
        %v124 = vld [vmem:[%s108 + $0x38] sm:$0xff]
        %125 = vst [vmem:[%s109 + $0x38] sm:$0xff] %v124
        %v126 = vld [vmem:[%s108 + $0x40] sm:$0xff]
        %127 = vst [vmem:[%s109 + $0x40] sm:$0xff] %v126
        %v128 = vld [vmem:[%s108 + $0x48] sm:$0xff]
        %129 = vst [vmem:[%s109 + $0x48] sm:$0xff] %v128
        %v130 = vld [vmem:[%s108 + $0x50] sm:$0xff]
        %131 = vst [vmem:[%s109 + $0x50] sm:$0xff] %v130
        %v132 = vld [vmem:[%s108 + $0x58] sm:$0xff]
        %133 = vst [vmem:[%s109 + $0x58] sm:$0xff] %v132
        %v134 = vld [vmem:[%s108 + $0x60] sm:$0xff]
        %135 = vst [vmem:[%s109 + $0x60] sm:$0xff] %v134
        %v136 = vld [vmem:[%s108 + $0x68] sm:$0xff]
        %137 = vst [vmem:[%s109 + $0x68] sm:$0xff] %v136
        %v138 = vld [vmem:[%s108 + $0x70] sm:$0xff]
        %139 = vst [vmem:[%s109 + $0x70] sm:$0xff] %v138
        %v140 = vld [vmem:[%s108 + $0x78] sm:$0xff]
        %141 = vst [vmem:[%s109 + $0x78] sm:$0xff] %v140
        %v142 = vld [vmem:[%s108 + $0x80] sm:$0xff]
        %143 = vst [vmem:[%s109 + $0x80] sm:$0xff] %v142
        %v144 = vld [vmem:[%s108 + $0x88] sm:$0xff]
        %145 = vst [vmem:[%s109 + $0x88] sm:$0xff] %v144
        %v146 = vld [vmem:[%s108 + $0x90] sm:$0xff]
        %147 = vst [vmem:[%s109 + $0x90] sm:$0xff] %v146
        %v148 = vld [vmem:[%s108 + $0x98] sm:$0xff]
        %149 = vst [vmem:[%s109 + $0x98] sm:$0xff] %v148
        %v150 = vld [vmem:[%s108 + $0xa0] sm:$0xff]
        %151 = vst [vmem:[%s109 + $0xa0] sm:$0xff] %v150
        %v152 = vld [vmem:[%s108 + $0xa8] sm:$0xff]
        %153 = vst [vmem:[%s109 + $0xa8] sm:$0xff] %v152
        %v154 = vld [vmem:[%s108 + $0xb0] sm:$0xff]
        %155 = vst [vmem:[%s109 + $0xb0] sm:$0xff] %v154
        %v156 = vld [vmem:[%s108 + $0xb8] sm:$0xff]
        %157 = vst [vmem:[%s109 + $0xb8] sm:$0xff] %v156
        %v158 = vld [vmem:[%s108 + $0xc0] sm:$0xff]
        %159 = vst [vmem:[%s109 + $0xc0] sm:$0xff] %v158
        %v160 = vld [vmem:[%s108 + $0xc8] sm:$0xff]
        %161 = vst [vmem:[%s109 + $0xc8] sm:$0xff] %v160
        %v162 = vld [vmem:[%s108 + $0xd0] sm:$0xff]
        %163 = vst [vmem:[%s109 + $0xd0] sm:$0xff] %v162
        %v164 = vld [vmem:[%s108 + $0xd8] sm:$0xff]
        %165 = vst [vmem:[%s109 + $0xd8] sm:$0xff] %v164
        %v166 = vld [vmem:[%s108 + $0xe0] sm:$0xff]
        %167 = vst [vmem:[%s109 + $0xe0] sm:$0xff] %v166
        %v168 = vld [vmem:[%s108 + $0xe8] sm:$0xff]
        %169 = vst [vmem:[%s109 + $0xe8] sm:$0xff] %v168
        %v170 = vld [vmem:[%s108 + $0xf0] sm:$0xff]
        %171 = vst [vmem:[%s109 + $0xf0] sm:$0xff] %v170
        %v172 = vld [vmem:[%s108 + $0xf8] sm:$0xff]
        %173 = vst [vmem:[%s109 + $0xf8] sm:$0xff] %v172
        %v174 = vld [vmem:[%s108 + $0x100] sm:$0xff]
        %175 = vst [vmem:[%s109 + $0x100] sm:$0xff] %v174
        %v176 = vld [vmem:[%s108 + $0x108] sm:$0xff]
        %177 = vst [vmem:[%s109 + $0x108] sm:$0xff] %v176
        %v178 = vld [vmem:[%s108 + $0x110] sm:$0xff]
        %179 = vst [vmem:[%s109 + $0x110] sm:$0xff] %v178
        %v180 = vld [vmem:[%s108 + $0x118] sm:$0xff]
        %181 = vst [vmem:[%s109 + $0x118] sm:$0xff] %v180
        %v182 = vld [vmem:[%s108 + $0x120] sm:$0xff]
        %183 = vst [vmem:[%s109 + $0x120] sm:$0xff] %v182
        %v184 = vld [vmem:[%s108 + $0x128] sm:$0xff]
        %185 = vst [vmem:[%s109 + $0x128] sm:$0xff] %v184
        %v186 = vld [vmem:[%s108 + $0x130] sm:$0xff]
        %187 = vst [vmem:[%s109 + $0x130] sm:$0xff] %v186
        %v188 = vld [vmem:[%s108 + $0x138] sm:$0xff]
        %189 = vst [vmem:[%s109 + $0x138] sm:$0xff] %v188
        %v190 = vld [vmem:[%s108 + $0x140] sm:$0xff]
        %191 = vst [vmem:[%s109 + $0x140] sm:$0xff] %v190
        %v192 = vld [vmem:[%s108 + $0x148] sm:$0xff]
        %193 = vst [vmem:[%s109 + $0x148] sm:$0xff] %v192
        %v194 = vld [vmem:[%s108 + $0x150] sm:$0xff]
        %195 = vst [vmem:[%s109 + $0x150] sm:$0xff] %v194
        %v196 = vld [vmem:[%s108 + $0x158] sm:$0xff]
        %197 = vst [vmem:[%s109 + $0x158] sm:$0xff] %v196
        %v198 = vld [vmem:[%s108 + $0x160] sm:$0xff]
        %199 = vst [vmem:[%s109 + $0x160] sm:$0xff] %v198
        %v200 = vld [vmem:[%s108 + $0x168] sm:$0xff]
        %201 = vst [vmem:[%s109 + $0x168] sm:$0xff] %v200
        %v202 = vld [vmem:[%s108 + $0x170] sm:$0xff]
        %203 = vst [vmem:[%s109 + $0x170] sm:$0xff] %v202
        %v204 = vld [vmem:[%s108 + $0x178] sm:$0xff]
        %205 = vst [vmem:[%s109 + $0x178] sm:$0xff] %v204
        %v206 = vld [vmem:[%s108 + $0x180] sm:$0xff]
        %207 = vst [vmem:[%s109 + $0x180] sm:$0xff] %v206
        %v208 = vld [vmem:[%s108 + $0x188] sm:$0xff]
        %209 = vst [vmem:[%s109 + $0x188] sm:$0xff] %v208
        %v210 = vld [vmem:[%s108 + $0x190] sm:$0xff]
        %211 = vst [vmem:[%s109 + $0x190] sm:$0xff] %v210
        %v212 = vld [vmem:[%s108 + $0x198] sm:$0xff]
        %213 = vst [vmem:[%s109 + $0x198] sm:$0xff] %v212
        %v214 = vld [vmem:[%s108 + $0x1a0] sm:$0xff]
        %215 = vst [vmem:[%s109 + $0x1a0] sm:$0xff] %v214
        %v216 = vld [vmem:[%s108 + $0x1a8] sm:$0xff]
        %217 = vst [vmem:[%s109 + $0x1a8] sm:$0xff] %v216
        %v218 = vld [vmem:[%s108 + $0x1b0] sm:$0xff]
        %219 = vst [vmem:[%s109 + $0x1b0] sm:$0xff] %v218
        %v220 = vld [vmem:[%s108 + $0x1b8] sm:$0xff]
        %221 = vst [vmem:[%s109 + $0x1b8] sm:$0xff] %v220
      $region67: #{gcn_net_forward.1} parent=61 // loop_footer
        %s107 = sadd.s32 1, %s103
      $region68: #{gcn_net_forward.1} parent=61 // loop_footer_branch
        %102 = sbr.rel target = $region64
      $region69: #{gcn_net_forward.1} parent=61 // loop_exit
        _
    $region62: #{gcn_net_forward.1} parent=46 // pred_fallthru
      _
    %p222 = pneg %p98
    // Predicated region
    $region70: #{gcn_net_forward.1} parent=46 // pred_check
      _
    $region71: #{gcn_net_forward.1} parent=46 // pred_check_branch
      %224 = sbr.rel (%p98) target = $region73
    $region72: #{gcn_net_forward.1} parent=46 // pred_region
      %s225 = sand.u32 448, 7
    $region73: #{gcn_net_forward.1} parent=46 // pred_fallthru
      _
  $region47: #{gcn_net_forward.1} parent=0 // pred_fallthru
    _
  // Predicated region
  $region48: #{gcn_net_forward.1} parent=0 // pred_check
    %p83 = pneg %p79
  $region49: #{gcn_net_forward.1} parent=0 // pred_check_branch
    %85 = sbr.rel (%p83) target = $region51
  $region50: #{gcn_net_forward.1} parent=0 // pred_region
    %s86 = sshllo.u32 0, 448
    loop: start=0, step=1, limit=1
    $region52: #{gcn_net_forward.1} parent=50 // loop_pre_header
      _
    $region53: #{gcn_net_forward.1} parent=50 // loop_header
      %s88 = sphi 0, %s92
      %p89 = scmp.ge.s32.totalorder %s88, 1
      %s93 = sphi %s4, %s4
      %s94 = sphi [#allocation3], [#allocation3]
    $region54: #{gcn_net_forward.1} parent=50 // loop_header_branch
      %91 = sbr.rel (%p89) target = $region58
    $region55: #{gcn_net_forward.1} parent=50 // loop_body
      %v95 = vld [vmem:[%s93] sm:%s86]
      %96 = vst [vmem:[%s94] sm:%s86] %v95
    $region56: #{gcn_net_forward.1} parent=50 // loop_footer
      %s92 = sadd.s32 1, %s88
    $region57: #{gcn_net_forward.1} parent=50 // loop_footer_branch
      %87 = sbr.rel target = $region53
    $region58: #{gcn_net_forward.1} parent=50 // loop_exit
      _
  $region51: #{gcn_net_forward.1} parent=0 // pred_fallthru
    _
  // Predicated region
  $region74: #{gcn_net_forward.1} parent=0 // pred_check
    _
  $region75: #{gcn_net_forward.1} parent=0 // pred_check_branch
    %228 = sbr.rel (0) target = $region77
  $region76: #{gcn_net_forward.1} parent=0 // pred_region
    %229 = vsyncadd %s77, 7168
  $region77: #{gcn_net_forward.1} parent=0 // pred_fallthru
    _
  %s230 = smul.u32 4, 16
  %s231 = smul.u32 %s230, 1
  %s232 = sshll.u32 %s231, 4
  %233 = dma.done [#allocation4], %s232
  %s234 = smul.u32 4, 7
  %s235 = smul.u32 %s234, 16
  %s236 = smul.u32 %s235, 1
  %s237 = sshll.u32 %s236, 4
  %238 = dma.done %s77, %s237
  %v239 = vld [vmem:[#allocation2] sm:$0xff]
  %v240 = vld [vmem:[#allocation2 + $0x8] sm:$0xff]
  %v241 = vld [vmem:[#allocation2 + $0x10] sm:$0xff]
  %v242 = vld [vmem:[#allocation2 + $0x18] sm:$0xff]
  %v243 = vld [vmem:[#allocation2 + $0x20] sm:$0xff]
  %v244 = vld [vmem:[#allocation2 + $0x28] sm:$0xff]
  %v245 = vld [vmem:[#allocation2 + $0x30] sm:$0xff]
  %v246 = vld [vmem:[#allocation2 + $0x38] sm:$0xff]
  %v247 = vld [vmem:[%s2] sm:$0xf]
  %v248 = vld [vmem:[%s2 + $0x4] sm:$0xf]
  %v249 = vld [vmem:[%s2 + $0x8] sm:$0xf]
  %v250 = vld [vmem:[%s2 + $0xc] sm:$0xf]
  %v251 = vld [vmem:[%s2 + $0x10] sm:$0xf]
  %v252 = vld [vmem:[%s2 + $0x14] sm:$0xf]
  %v253 = vld [vmem:[%s2 + $0x18] sm:$0xf]
  %v254 = vld [vmem:[%s2 + $0x1c] sm:$0xf]
  %v255 = vld [vmem:[%s2 + $0x20] sm:$0xf]
  %v256 = vld [vmem:[%s2 + $0x24] sm:$0xf]
  %v257 = vld [vmem:[%s2 + $0x28] sm:$0xf]
  %v258 = vld [vmem:[%s2 + $0x2c] sm:$0xf]
  %v259 = vld [vmem:[%s2 + $0x30] sm:$0xf]
  %v260 = vld [vmem:[%s2 + $0x34] sm:$0xf]
  %v261 = vld [vmem:[%s2 + $0x38] sm:$0xf]
  %v262 = vld [vmem:[%s2 + $0x3c] sm:$0xf]
  %v263 = vld [vmem:[#allocation3] sm:$0xff]
  %v264 = vld [vmem:[#allocation3 + $0x8] sm:$0xff]
  %v265 = vld [vmem:[#allocation3 + $0x10] sm:$0xff]
  %v266 = vld [vmem:[#allocation3 + $0x18] sm:$0xff]
  %v267 = vld [vmem:[#allocation3 + $0x20] sm:$0xff]
  %v268 = vld [vmem:[#allocation3 + $0x28] sm:$0xff]
  %v269 = vld [vmem:[#allocation3 + $0x30] sm:$0xff]
  %v270 = vld [vmem:[#allocation3 + $0x38] sm:$0xff]
  %v287 = vunpack.c.l.b16 %v247
  %v288 = vunpack.c.l.b16 %v248
  %v289 = vunpack.c.l.b16 %v249
  %v290 = vunpack.c.l.b16 %v250
  %v291 = vunpack.c.l.b16 %v251
  %v292 = vunpack.c.l.b16 %v252
  %v293 = vunpack.c.l.b16 %v253
  %v294 = vunpack.c.l.b16 %v254
  %v295 = vunpack.c.l.b16 %v255
  %v296 = vunpack.c.l.b16 %v256
  %v297 = vunpack.c.l.b16 %v257
  %v298 = vunpack.c.l.b16 %v258
  %v299 = vunpack.c.l.b16 %v259
  %v300 = vunpack.c.l.b16 %v260
  %v301 = vunpack.c.l.b16 %v261
  %v302 = vunpack.c.l.b16 %v262
  %v303 = vpack.c.b16 %v288, %v287
  %v304 = vpack.c.b16 %v290, %v289
  %v305 = vpack.c.b16 %v292, %v291
  %v306 = vpack.c.b16 %v294, %v293
  %v307 = vpack.c.b16 %v296, %v295
  %v308 = vpack.c.b16 %v298, %v297
  %v309 = vpack.c.b16 %v300, %v299
  %v310 = vpack.c.b16 %v302, %v301
  %319 = vmatprep.subr.bf16.mxu0 0
  %320 = vmatpush1.bf16.msra.mxu0 %v263
  %321 = vmatprep.subr.bf16.mxu0 0
  %322 = vmatpush1.bf16.msra.mxu0 %v264
  %323 = vmatprep.subr.bf16.mxu0 0
  %324 = vmatpush1.bf16.msra.mxu0 %v265
  %325 = vmatprep.subr.bf16.mxu0 0
  %326 = vmatpush1.bf16.msra.mxu0 %v266
  %327 = vmatprep.subr.bf16.mxu0 0
  %328 = vmatpush1.bf16.msra.mxu0 %v267
  %329 = vmatprep.subr.bf16.mxu0 0
  %330 = vmatpush1.bf16.msra.mxu0 %v268
  %331 = vmatprep.subr.bf16.mxu0 0
  %332 = vmatpush1.bf16.msra.mxu0 %v269
  %333 = vmatprep.subr.bf16.mxu0 0
  %334 = vmatpush1.bf16.msra.mxu0 %v270
  %335 = vmatprep.subr.bf16.mxu0 0
  %336 = vmatpush1.bf16.msra.mxu0 0
  %337 = vmatprep.subr.bf16.mxu0 0
  %338 = vmatpush1.bf16.msra.mxu0 0
  %339 = vmatprep.subr.bf16.mxu0 0
  %340 = vmatpush1.bf16.msra.mxu0 0
  %341 = vmatprep.subr.bf16.mxu0 0
  %342 = vmatpush1.bf16.msra.mxu0 0
  %343 = vmatprep.subr.bf16.mxu0 0
  %344 = vmatpush1.bf16.msra.mxu0 0
  %345 = vmatprep.subr.bf16.mxu0 0
  %346 = vmatpush1.bf16.msra.mxu0 0
  %347 = vmatprep.subr.bf16.mxu0 0
  %348 = vmatpush1.bf16.msra.mxu0 0
  %349 = vmatprep.subr.bf16.mxu0 0
  %350 = vmatpush1.bf16.msra.mxu0 0
  %351 = vmatprep.mubr.bf16.mxu0 0
  %352 = vmatmul.mubr.bf16.gmra.mrb[0].mxu0 %v303
  %v353 = vpop.f32.mrb[0].mxu0
  %v354 = vadd.f32 0.0, %v353
  %v355 = vpop.f32.mrb[0].mxu0
  %v356 = vpop.f32.mrb[0].mxu0
  %v357 = vadd.f32 0.0, %v356
  %v358 = vpop.f32.mrb[0].mxu0
  %359 = vmatprep.mubr.bf16.mxu0 0
  %360 = vmatmul.mubr.bf16.gmra.mrb[0].mxu0 %v304
  %v361 = vpop.f32.mrb[0].mxu0
  %v362 = vadd.f32 0.0, %v361
  %v363 = vpop.f32.mrb[0].mxu0
  %v364 = vpop.f32.mrb[0].mxu0
  %v365 = vadd.f32 0.0, %v364
  %v366 = vpop.f32.mrb[0].mxu0
  %367 = vmatprep.mubr.bf16.mxu0 0
  %368 = vmatmul.mubr.bf16.gmra.mrb[0].mxu0 %v305
  %v369 = vpop.f32.mrb[0].mxu0
  %v370 = vadd.f32 0.0, %v369
  %v371 = vpop.f32.mrb[0].mxu0
  %v372 = vpop.f32.mrb[0].mxu0
  %v373 = vadd.f32 0.0, %v372
  %v374 = vpop.f32.mrb[0].mxu0
  %375 = vmatprep.mubr.bf16.mxu0 0
  %376 = vmatmul.mubr.bf16.gmra.mrb[0].mxu0 %v306
  %v377 = vpop.f32.mrb[0].mxu0
  %v378 = vadd.f32 0.0, %v377
  %v379 = vpop.f32.mrb[0].mxu0
  %v380 = vpop.f32.mrb[0].mxu0
  %v381 = vadd.f32 0.0, %v380
  %v382 = vpop.f32.mrb[0].mxu0
  %383 = vmatprep.mubr.bf16.mxu0 0
  %384 = vmatmul.mubr.bf16.gmra.mrb[0].mxu0 %v307
  %v385 = vpop.f32.mrb[0].mxu0
  %v386 = vadd.f32 0.0, %v385
  %v387 = vpop.f32.mrb[0].mxu0
  %v388 = vpop.f32.mrb[0].mxu0
  %v389 = vadd.f32 0.0, %v388
  %v390 = vpop.f32.mrb[0].mxu0
  %391 = vmatprep.mubr.bf16.mxu0 0
  %392 = vmatmul.mubr.bf16.gmra.mrb[0].mxu0 %v308
  %v393 = vpop.f32.mrb[0].mxu0
  %v394 = vadd.f32 0.0, %v393
  %v395 = vpop.f32.mrb[0].mxu0
  %v396 = vpop.f32.mrb[0].mxu0
  %v397 = vadd.f32 0.0, %v396
  %v398 = vpop.f32.mrb[0].mxu0
  %399 = vmatprep.mubr.bf16.mxu0 0
  %400 = vmatmul.mubr.bf16.gmra.mrb[0].mxu0 %v309
  %v401 = vpop.f32.mrb[0].mxu0
  %v402 = vadd.f32 0.0, %v401
  %v403 = vpop.f32.mrb[0].mxu0
  %v404 = vpop.f32.mrb[0].mxu0
  %v405 = vadd.f32 0.0, %v404
  %v406 = vpop.f32.mrb[0].mxu0
  %407 = vmatprep.mubr.bf16.mxu0 0
  %408 = vmatmul.mubr.bf16.gmra.mrb[0].mxu0 %v310
  %v409 = vpop.f32.mrb[0].mxu0
  %v410 = vadd.f32 0.0, %v409
  %v411 = vpop.f32.mrb[0].mxu0
  %v412 = vpop.f32.mrb[0].mxu0
  %v413 = vadd.f32 0.0, %v412
  %v414 = vpop.f32.mrb[0].mxu0
  %415 = vdwg.mxu0
  %v416 = vpack.c.bf16 %v357, %v354
  %v417 = vpack.c.bf16 %v365, %v362
  %v418 = vpack.c.bf16 %v373, %v370
  %v419 = vpack.c.bf16 %v381, %v378
  %v420 = vpack.c.bf16 %v389, %v386
  %v421 = vpack.c.bf16 %v397, %v394
  %v422 = vpack.c.bf16 %v405, %v402
  %v423 = vpack.c.bf16 %v413, %v410
  %v424 = vld [vmem:[%s3] sm:$0x1]
  %v425 = vlaneseq
  %v426 = vshrl.u32 %v425, 7
  %v427 = vsub.s32 0, %v426
  %v428 = vrot.slane %v424, %v427
  %429 = vmatprep.subr.bf16.mxu0 0
  %430 = vmatpush1.bf16.msra.mxu0 %v416
  %431 = vmatprep.subr.bf16.mxu0 0
  %432 = vmatpush1.bf16.msra.mxu0 %v417
  %433 = vmatprep.subr.bf16.mxu0 0
  %434 = vmatpush1.bf16.msra.mxu0 %v418
  %435 = vmatprep.subr.bf16.mxu0 0
  %436 = vmatpush1.bf16.msra.mxu0 %v419
  %437 = vmatprep.subr.bf16.mxu0 0
  %438 = vmatpush1.bf16.msra.mxu0 %v420
  %439 = vmatprep.subr.bf16.mxu0 0
  %440 = vmatpush1.bf16.msra.mxu0 %v421
  %441 = vmatprep.subr.bf16.mxu0 0
  %442 = vmatpush1.bf16.msra.mxu0 %v422
  %443 = vmatprep.subr.bf16.mxu0 0
  %444 = vmatpush1.bf16.msra.mxu0 %v423
  %445 = vmatprep.subr.bf16.mxu0 0
  %446 = vmatpush1.bf16.msra.mxu0 0
  %447 = vmatprep.subr.bf16.mxu0 0
  %448 = vmatpush1.bf16.msra.mxu0 0
  %449 = vmatprep.subr.bf16.mxu0 0
  %450 = vmatpush1.bf16.msra.mxu0 0
  %451 = vmatprep.subr.bf16.mxu0 0
  %452 = vmatpush1.bf16.msra.mxu0 0
  %453 = vmatprep.subr.bf16.mxu0 0
  %454 = vmatpush1.bf16.msra.mxu0 0
  %455 = vmatprep.subr.bf16.mxu0 0
  %456 = vmatpush1.bf16.msra.mxu0 0
  %457 = vmatprep.subr.bf16.mxu0 0
  %458 = vmatpush1.bf16.msra.mxu0 0
  %459 = vmatprep.subr.bf16.mxu0 0
  %460 = vmatpush1.bf16.msra.mxu0 0
  %461 = vmatprep.mubr.bf16.mxu0 0
  %462 = vmatmul.mubr.bf16.gmra.mrb[0].mxu0 %v239
  %v463 = vpop.f32.mrb[0].mxu0
  %v464 = vadd.f32 %v428, %v463
  %v465 = vpop.f32.mrb[0].mxu0
  %v466 = vpop.f32.mrb[0].mxu0
  %v467 = vadd.f32 %v428, %v466
  %v468 = vpop.f32.mrb[0].mxu0
  %469 = vmatprep.mubr.bf16.mxu0 0
  %470 = vmatmul.mubr.bf16.gmra.mrb[0].mxu0 %v240
  %v471 = vpop.f32.mrb[0].mxu0
  %v472 = vadd.f32 %v428, %v471
  %v473 = vpop.f32.mrb[0].mxu0
  %v474 = vpop.f32.mrb[0].mxu0
  %v475 = vadd.f32 %v428, %v474
  %v476 = vpop.f32.mrb[0].mxu0
  %477 = vmatprep.mubr.bf16.mxu0 0
  %478 = vmatmul.mubr.bf16.gmra.mrb[0].mxu0 %v241
  %v479 = vpop.f32.mrb[0].mxu0
  %v480 = vadd.f32 %v428, %v479
  %v481 = vpop.f32.mrb[0].mxu0
  %v482 = vpop.f32.mrb[0].mxu0
  %v483 = vadd.f32 %v428, %v482
  %v484 = vpop.f32.mrb[0].mxu0
  %485 = vmatprep.mubr.bf16.mxu0 0
  %486 = vmatmul.mubr.bf16.gmra.mrb[0].mxu0 %v242
  %v487 = vpop.f32.mrb[0].mxu0
  %v488 = vadd.f32 %v428, %v487
  %v489 = vpop.f32.mrb[0].mxu0
  %v490 = vpop.f32.mrb[0].mxu0
  %v491 = vadd.f32 %v428, %v490
  %v492 = vpop.f32.mrb[0].mxu0
  %493 = vmatprep.mubr.bf16.mxu0 0
  %494 = vmatmul.mubr.bf16.gmra.mrb[0].mxu0 %v243
  %v495 = vpop.f32.mrb[0].mxu0
  %v496 = vadd.f32 %v428, %v495
  %v497 = vpop.f32.mrb[0].mxu0
  %v498 = vpop.f32.mrb[0].mxu0
  %v499 = vadd.f32 %v428, %v498
  %v500 = vpop.f32.mrb[0].mxu0
  %501 = vmatprep.mubr.bf16.mxu0 0
  %502 = vmatmul.mubr.bf16.gmra.mrb[0].mxu0 %v244
  %v503 = vpop.f32.mrb[0].mxu0
  %v504 = vadd.f32 %v428, %v503
  %v505 = vpop.f32.mrb[0].mxu0
  %v506 = vpop.f32.mrb[0].mxu0
  %v507 = vadd.f32 %v428, %v506
  %v508 = vpop.f32.mrb[0].mxu0
  %509 = vmatprep.mubr.bf16.mxu0 0
  %510 = vmatmul.mubr.bf16.gmra.mrb[0].mxu0 %v245
  %v511 = vpop.f32.mrb[0].mxu0
  %v512 = vadd.f32 %v428, %v511
  %v513 = vpop.f32.mrb[0].mxu0
  %v514 = vpop.f32.mrb[0].mxu0
  %v515 = vadd.f32 %v428, %v514
  %v516 = vpop.f32.mrb[0].mxu0
  %517 = vmatprep.mubr.bf16.mxu0 0
  %518 = vmatmul.mubr.bf16.gmra.mrb[0].mxu0 %v246
  %v519 = vpop.f32.mrb[0].mxu0
  %v520 = vadd.f32 %v428, %v519
  %v521 = vpop.f32.mrb[0].mxu0
  %v522 = vpop.f32.mrb[0].mxu0
  %v523 = vadd.f32 %v428, %v522
  %v524 = vpop.f32.mrb[0].mxu0
  %525 = vdwg.mxu0
  %v526 = vmax.f32 %v464, 0.0
  %v527 = vmax.f32 %v467, 0.0
  %v528 = vmax.f32 %v472, 0.0
  %v529 = vmax.f32 %v475, 0.0
  %v530 = vmax.f32 %v480, 0.0
  %v531 = vmax.f32 %v483, 0.0
  %v532 = vmax.f32 %v488, 0.0
  %v533 = vmax.f32 %v491, 0.0
  %v534 = vmax.f32 %v496, 0.0
  %v535 = vmax.f32 %v499, 0.0
  %v536 = vmax.f32 %v504, 0.0
  %v537 = vmax.f32 %v507, 0.0
  %v538 = vmax.f32 %v512, 0.0
  %v539 = vmax.f32 %v515, 0.0
  %v540 = vmax.f32 %v520, 0.0
  %v541 = vmax.f32 %v523, 0.0
  %v542 = vpack.c.bf16 %v527, %v526
  %v543 = vpack.c.bf16 %v529, %v528
  %v544 = vpack.c.bf16 %v531, %v530
  %v545 = vpack.c.bf16 %v533, %v532
  %v546 = vpack.c.bf16 %v535, %v534
  %v547 = vpack.c.bf16 %v537, %v536
  %v548 = vpack.c.bf16 %v539, %v538
  %v549 = vpack.c.bf16 %v541, %v540
  %s550 = scalar_lea.vmem [#allocation3], 64
  %v551 = vld [vmem:[%s550] sm:$0xff]
  %v552 = vld [vmem:[%s550 + $0x8] sm:$0xff]
  %v553 = vld [vmem:[%s550 + $0x10] sm:$0xff]
  %v554 = vld [vmem:[%s550 + $0x18] sm:$0xff]
  %v555 = vld [vmem:[%s550 + $0x20] sm:$0xff]
  %v556 = vld [vmem:[%s550 + $0x28] sm:$0xff]
  %v557 = vld [vmem:[%s550 + $0x30] sm:$0xff]
  %v558 = vld [vmem:[%s550 + $0x38] sm:$0xff]
  %559 = vmatprep.subr.bf16.mxu0 0
  %560 = vmatpush1.bf16.msra.mxu0 %v551
  %561 = vmatprep.subr.bf16.mxu0 0
  %562 = vmatpush1.bf16.msra.mxu0 %v552
  %563 = vmatprep.subr.bf16.mxu0 0
  %564 = vmatpush1.bf16.msra.mxu0 %v553
  %565 = vmatprep.subr.bf16.mxu0 0
  %566 = vmatpush1.bf16.msra.mxu0 %v554
  %567 = vmatprep.subr.bf16.mxu0 0
  %568 = vmatpush1.bf16.msra.mxu0 %v555
  %569 = vmatprep.subr.bf16.mxu0 0
  %570 = vmatpush1.bf16.msra.mxu0 %v556
  %571 = vmatprep.subr.bf16.mxu0 0
  %572 = vmatpush1.bf16.msra.mxu0 %v557
  %573 = vmatprep.subr.bf16.mxu0 0
  %574 = vmatpush1.bf16.msra.mxu0 %v558
  %575 = vmatprep.subr.bf16.mxu0 0
  %576 = vmatpush1.bf16.msra.mxu0 0
  %577 = vmatprep.subr.bf16.mxu0 0
  %578 = vmatpush1.bf16.msra.mxu0 0
  %579 = vmatprep.subr.bf16.mxu0 0
  %580 = vmatpush1.bf16.msra.mxu0 0
  %581 = vmatprep.subr.bf16.mxu0 0
  %582 = vmatpush1.bf16.msra.mxu0 0
  %583 = vmatprep.subr.bf16.mxu0 0
  %584 = vmatpush1.bf16.msra.mxu0 0
  %585 = vmatprep.subr.bf16.mxu0 0
  %586 = vmatpush1.bf16.msra.mxu0 0
  %587 = vmatprep.subr.bf16.mxu0 0
  %588 = vmatpush1.bf16.msra.mxu0 0
  %589 = vmatprep.subr.bf16.mxu0 0
  %590 = vmatpush1.bf16.msra.mxu0 0
  %591 = vmatprep.mubr.bf16.mxu0 0
  %592 = vmatmul.mubr.bf16.gmra.mrb[0].mxu0 %v542
  %v593 = vpop.f32.mrb[0].mxu0
  %v594 = vadd.f32 0.0, %v593
  %v595 = vpop.f32.mrb[0].mxu0
  %v596 = vpop.f32.mrb[0].mxu0
  %v597 = vadd.f32 0.0, %v596
  %v598 = vpop.f32.mrb[0].mxu0
  %599 = vmatprep.mubr.bf16.mxu0 0
  %600 = vmatmul.mubr.bf16.gmra.mrb[0].mxu0 %v543
  %v601 = vpop.f32.mrb[0].mxu0
  %v602 = vadd.f32 0.0, %v601
  %v603 = vpop.f32.mrb[0].mxu0
  %v604 = vpop.f32.mrb[0].mxu0
  %v605 = vadd.f32 0.0, %v604
  %v606 = vpop.f32.mrb[0].mxu0
  %607 = vmatprep.mubr.bf16.mxu0 0
  %608 = vmatmul.mubr.bf16.gmra.mrb[0].mxu0 %v544
  %v609 = vpop.f32.mrb[0].mxu0
  %v610 = vadd.f32 0.0, %v609
  %v611 = vpop.f32.mrb[0].mxu0
  %v612 = vpop.f32.mrb[0].mxu0
  %v613 = vadd.f32 0.0, %v612
  %v614 = vpop.f32.mrb[0].mxu0
  %615 = vmatprep.mubr.bf16.mxu0 0
  %616 = vmatmul.mubr.bf16.gmra.mrb[0].mxu0 %v545
  %v617 = vpop.f32.mrb[0].mxu0
  %v618 = vadd.f32 0.0, %v617
  %v619 = vpop.f32.mrb[0].mxu0
  %v620 = vpop.f32.mrb[0].mxu0
  %v621 = vadd.f32 0.0, %v620
  %v622 = vpop.f32.mrb[0].mxu0
  %623 = vmatprep.mubr.bf16.mxu0 0
  %624 = vmatmul.mubr.bf16.gmra.mrb[0].mxu0 %v546
  %v625 = vpop.f32.mrb[0].mxu0
  %v626 = vadd.f32 0.0, %v625
  %v627 = vpop.f32.mrb[0].mxu0
  %v628 = vpop.f32.mrb[0].mxu0
  %v629 = vadd.f32 0.0, %v628
  %v630 = vpop.f32.mrb[0].mxu0
  %631 = vmatprep.mubr.bf16.mxu0 0
  %632 = vmatmul.mubr.bf16.gmra.mrb[0].mxu0 %v547
  %v633 = vpop.f32.mrb[0].mxu0
  %v634 = vadd.f32 0.0, %v633
  %v635 = vpop.f32.mrb[0].mxu0
  %v636 = vpop.f32.mrb[0].mxu0
  %v637 = vadd.f32 0.0, %v636
  %v638 = vpop.f32.mrb[0].mxu0
  %639 = vmatprep.mubr.bf16.mxu0 0
  %640 = vmatmul.mubr.bf16.gmra.mrb[0].mxu0 %v548
  %v641 = vpop.f32.mrb[0].mxu0
  %v642 = vadd.f32 0.0, %v641
  %v643 = vpop.f32.mrb[0].mxu0
  %v644 = vpop.f32.mrb[0].mxu0
  %v645 = vadd.f32 0.0, %v644
  %v646 = vpop.f32.mrb[0].mxu0
  %647 = vmatprep.mubr.bf16.mxu0 0
  %648 = vmatmul.mubr.bf16.gmra.mrb[0].mxu0 %v549
  %v649 = vpop.f32.mrb[0].mxu0
  %v650 = vadd.f32 0.0, %v649
  %v651 = vpop.f32.mrb[0].mxu0
  %v652 = vpop.f32.mrb[0].mxu0
  %v653 = vadd.f32 0.0, %v652
  %v654 = vpop.f32.mrb[0].mxu0
  %655 = vdwg.mxu0
  %v656 = vpack.c.bf16 %v597, %v594
  %v657 = vpack.c.bf16 %v605, %v602
  %v658 = vpack.c.bf16 %v613, %v610
  %v659 = vpack.c.bf16 %v621, %v618
  %v660 = vpack.c.bf16 %v629, %v626
  %v661 = vpack.c.bf16 %v637, %v634
  %v662 = vpack.c.bf16 %v645, %v642
  %v663 = vpack.c.bf16 %v653, %v650
  %v664 = vld [vmem:[%s3 + $0x1] sm:$0x1]
  %v665 = vlaneseq
  %v666 = vshrl.u32 %v665, 7
  %v667 = vsub.s32 0, %v666
  %v668 = vrot.slane %v664, %v667
  %669 = vmatprep.subr.bf16.mxu0 0
  %670 = vmatpush1.bf16.msra.mxu0 %v656
  %671 = vmatprep.subr.bf16.mxu0 0
  %672 = vmatpush1.bf16.msra.mxu0 %v657
  %673 = vmatprep.subr.bf16.mxu0 0
  %674 = vmatpush1.bf16.msra.mxu0 %v658
  %675 = vmatprep.subr.bf16.mxu0 0
  %676 = vmatpush1.bf16.msra.mxu0 %v659
  %677 = vmatprep.subr.bf16.mxu0 0
  %678 = vmatpush1.bf16.msra.mxu0 %v660
  %679 = vmatprep.subr.bf16.mxu0 0
  %680 = vmatpush1.bf16.msra.mxu0 %v661
  %681 = vmatprep.subr.bf16.mxu0 0
  %682 = vmatpush1.bf16.msra.mxu0 %v662
  %683 = vmatprep.subr.bf16.mxu0 0
  %684 = vmatpush1.bf16.msra.mxu0 %v663
  %685 = vmatprep.subr.bf16.mxu0 0
  %686 = vmatpush1.bf16.msra.mxu0 0
  %687 = vmatprep.subr.bf16.mxu0 0
  %688 = vmatpush1.bf16.msra.mxu0 0
  %689 = vmatprep.subr.bf16.mxu0 0
  %690 = vmatpush1.bf16.msra.mxu0 0
  %691 = vmatprep.subr.bf16.mxu0 0
  %692 = vmatpush1.bf16.msra.mxu0 0
  %693 = vmatprep.subr.bf16.mxu0 0
  %694 = vmatpush1.bf16.msra.mxu0 0
  %695 = vmatprep.subr.bf16.mxu0 0
  %696 = vmatpush1.bf16.msra.mxu0 0
  %697 = vmatprep.subr.bf16.mxu0 0
  %698 = vmatpush1.bf16.msra.mxu0 0
  %699 = vmatprep.subr.bf16.mxu0 0
  %700 = vmatpush1.bf16.msra.mxu0 0
  %701 = vmatprep.mubr.bf16.mxu0 0
  %702 = vmatmul.mubr.bf16.gmra.mrb[0].mxu0 %v239
  %v703 = vpop.f32.mrb[0].mxu0
  %v704 = vadd.f32 %v668, %v703
  %v705 = vpop.f32.mrb[0].mxu0
  %v706 = vpop.f32.mrb[0].mxu0
  %v707 = vadd.f32 %v668, %v706
  %v708 = vpop.f32.mrb[0].mxu0
  %709 = vmatprep.mubr.bf16.mxu0 0
  %710 = vmatmul.mubr.bf16.gmra.mrb[0].mxu0 %v240
  %v711 = vpop.f32.mrb[0].mxu0
  %v712 = vadd.f32 %v668, %v711
  %v713 = vpop.f32.mrb[0].mxu0
  %v714 = vpop.f32.mrb[0].mxu0
  %v715 = vadd.f32 %v668, %v714
  %v716 = vpop.f32.mrb[0].mxu0
  %717 = vmatprep.mubr.bf16.mxu0 0
  %718 = vmatmul.mubr.bf16.gmra.mrb[0].mxu0 %v241
  %v719 = vpop.f32.mrb[0].mxu0
  %v720 = vadd.f32 %v668, %v719
  %v721 = vpop.f32.mrb[0].mxu0
  %v722 = vpop.f32.mrb[0].mxu0
  %v723 = vadd.f32 %v668, %v722
  %v724 = vpop.f32.mrb[0].mxu0
  %725 = vmatprep.mubr.bf16.mxu0 0
  %726 = vmatmul.mubr.bf16.gmra.mrb[0].mxu0 %v242
  %v727 = vpop.f32.mrb[0].mxu0
  %v728 = vadd.f32 %v668, %v727
  %v729 = vpop.f32.mrb[0].mxu0
  %v730 = vpop.f32.mrb[0].mxu0
  %v731 = vadd.f32 %v668, %v730
  %v732 = vpop.f32.mrb[0].mxu0
  %733 = vmatprep.mubr.bf16.mxu0 0
  %734 = vmatmul.mubr.bf16.gmra.mrb[0].mxu0 %v243
  %v735 = vpop.f32.mrb[0].mxu0
  %v736 = vadd.f32 %v668, %v735
  %v737 = vpop.f32.mrb[0].mxu0
  %v738 = vpop.f32.mrb[0].mxu0
  %v739 = vadd.f32 %v668, %v738
  %v740 = vpop.f32.mrb[0].mxu0
  %741 = vmatprep.mubr.bf16.mxu0 0
  %742 = vmatmul.mubr.bf16.gmra.mrb[0].mxu0 %v244
  %v743 = vpop.f32.mrb[0].mxu0
  %v744 = vadd.f32 %v668, %v743
  %v745 = vpop.f32.mrb[0].mxu0
  %v746 = vpop.f32.mrb[0].mxu0
  %v747 = vadd.f32 %v668, %v746
  %v748 = vpop.f32.mrb[0].mxu0
  %749 = vmatprep.mubr.bf16.mxu0 0
  %750 = vmatmul.mubr.bf16.gmra.mrb[0].mxu0 %v245
  %v751 = vpop.f32.mrb[0].mxu0
  %v752 = vadd.f32 %v668, %v751
  %v753 = vpop.f32.mrb[0].mxu0
  %v754 = vpop.f32.mrb[0].mxu0
  %v755 = vadd.f32 %v668, %v754
  %v756 = vpop.f32.mrb[0].mxu0
  %757 = vmatprep.mubr.bf16.mxu0 0
  %758 = vmatmul.mubr.bf16.gmra.mrb[0].mxu0 %v246
  %v759 = vpop.f32.mrb[0].mxu0
  %v760 = vadd.f32 %v668, %v759
  %v761 = vpop.f32.mrb[0].mxu0
  %v762 = vpop.f32.mrb[0].mxu0
  %v763 = vadd.f32 %v668, %v762
  %v764 = vpop.f32.mrb[0].mxu0
  %765 = vdwg.mxu0
  %v766 = vmax.f32 %v704, 0.0
  %v767 = vmax.f32 %v707, 0.0
  %v768 = vmax.f32 %v712, 0.0
  %v769 = vmax.f32 %v715, 0.0
  %v770 = vmax.f32 %v720, 0.0
  %v771 = vmax.f32 %v723, 0.0
  %v772 = vmax.f32 %v728, 0.0
  %v773 = vmax.f32 %v731, 0.0
  %v774 = vmax.f32 %v736, 0.0
  %v775 = vmax.f32 %v739, 0.0
  %v776 = vmax.f32 %v744, 0.0
  %v777 = vmax.f32 %v747, 0.0
  %v778 = vmax.f32 %v752, 0.0
  %v779 = vmax.f32 %v755, 0.0
  %v780 = vmax.f32 %v760, 0.0
  %v781 = vmax.f32 %v763, 0.0
  %v782 = vpack.c.bf16 %v767, %v766
  %v783 = vpack.c.bf16 %v769, %v768
  %v784 = vpack.c.bf16 %v771, %v770
  %v785 = vpack.c.bf16 %v773, %v772
  %v786 = vpack.c.bf16 %v775, %v774
  %v787 = vpack.c.bf16 %v777, %v776
  %v788 = vpack.c.bf16 %v779, %v778
  %v789 = vpack.c.bf16 %v781, %v780
  %s790 = scalar_lea.vmem [#allocation3], 128
  %v791 = vld [vmem:[%s790] sm:$0xff]
  %v792 = vld [vmem:[%s790 + $0x8] sm:$0xff]
  %v793 = vld [vmem:[%s790 + $0x10] sm:$0xff]
  %v794 = vld [vmem:[%s790 + $0x18] sm:$0xff]
  %v795 = vld [vmem:[%s790 + $0x20] sm:$0xff]
  %v796 = vld [vmem:[%s790 + $0x28] sm:$0xff]
  %v797 = vld [vmem:[%s790 + $0x30] sm:$0xff]
  %v798 = vld [vmem:[%s790 + $0x38] sm:$0xff]
  %799 = vmatprep.subr.bf16.mxu0 0
  %800 = vmatpush1.bf16.msra.mxu0 %v791
  %801 = vmatprep.subr.bf16.mxu0 0
  %802 = vmatpush1.bf16.msra.mxu0 %v792
  %803 = vmatprep.subr.bf16.mxu0 0
  %804 = vmatpush1.bf16.msra.mxu0 %v793
  %805 = vmatprep.subr.bf16.mxu0 0
  %806 = vmatpush1.bf16.msra.mxu0 %v794
  %807 = vmatprep.subr.bf16.mxu0 0
  %808 = vmatpush1.bf16.msra.mxu0 %v795
  %809 = vmatprep.subr.bf16.mxu0 0
  %810 = vmatpush1.bf16.msra.mxu0 %v796
  %811 = vmatprep.subr.bf16.mxu0 0
  %812 = vmatpush1.bf16.msra.mxu0 %v797
  %813 = vmatprep.subr.bf16.mxu0 0
  %814 = vmatpush1.bf16.msra.mxu0 %v798
  %815 = vmatprep.subr.bf16.mxu0 0
  %816 = vmatpush1.bf16.msra.mxu0 0
  %817 = vmatprep.subr.bf16.mxu0 0
  %818 = vmatpush1.bf16.msra.mxu0 0
  %819 = vmatprep.subr.bf16.mxu0 0
  %820 = vmatpush1.bf16.msra.mxu0 0
  %821 = vmatprep.subr.bf16.mxu0 0
  %822 = vmatpush1.bf16.msra.mxu0 0
  %823 = vmatprep.subr.bf16.mxu0 0
  %824 = vmatpush1.bf16.msra.mxu0 0
  %825 = vmatprep.subr.bf16.mxu0 0
  %826 = vmatpush1.bf16.msra.mxu0 0
  %827 = vmatprep.subr.bf16.mxu0 0
  %828 = vmatpush1.bf16.msra.mxu0 0
  %829 = vmatprep.subr.bf16.mxu0 0
  %830 = vmatpush1.bf16.msra.mxu0 0
  %831 = vmatprep.mubr.bf16.mxu0 0
  %832 = vmatmul.mubr.bf16.gmra.mrb[0].mxu0 %v782
  %v833 = vpop.f32.mrb[0].mxu0
  %v834 = vadd.f32 0.0, %v833
  %v835 = vpop.f32.mrb[0].mxu0
  %v836 = vpop.f32.mrb[0].mxu0
  %v837 = vadd.f32 0.0, %v836
  %v838 = vpop.f32.mrb[0].mxu0
  %839 = vmatprep.mubr.bf16.mxu0 0
  %840 = vmatmul.mubr.bf16.gmra.mrb[0].mxu0 %v783
  %v841 = vpop.f32.mrb[0].mxu0
  %v842 = vadd.f32 0.0, %v841
  %v843 = vpop.f32.mrb[0].mxu0
  %v844 = vpop.f32.mrb[0].mxu0
  %v845 = vadd.f32 0.0, %v844
  %v846 = vpop.f32.mrb[0].mxu0
  %847 = vmatprep.mubr.bf16.mxu0 0
  %848 = vmatmul.mubr.bf16.gmra.mrb[0].mxu0 %v784
  %v849 = vpop.f32.mrb[0].mxu0
  %v850 = vadd.f32 0.0, %v849
  %v851 = vpop.f32.mrb[0].mxu0
  %v852 = vpop.f32.mrb[0].mxu0
  %v853 = vadd.f32 0.0, %v852
  %v854 = vpop.f32.mrb[0].mxu0
  %855 = vmatprep.mubr.bf16.mxu0 0
  %856 = vmatmul.mubr.bf16.gmra.mrb[0].mxu0 %v785
  %v857 = vpop.f32.mrb[0].mxu0
  %v858 = vadd.f32 0.0, %v857
  %v859 = vpop.f32.mrb[0].mxu0
  %v860 = vpop.f32.mrb[0].mxu0
  %v861 = vadd.f32 0.0, %v860
  %v862 = vpop.f32.mrb[0].mxu0
  %863 = vmatprep.mubr.bf16.mxu0 0
  %864 = vmatmul.mubr.bf16.gmra.mrb[0].mxu0 %v786
  %v865 = vpop.f32.mrb[0].mxu0
  %v866 = vadd.f32 0.0, %v865
  %v867 = vpop.f32.mrb[0].mxu0
  %v868 = vpop.f32.mrb[0].mxu0
  %v869 = vadd.f32 0.0, %v868
  %v870 = vpop.f32.mrb[0].mxu0
  %871 = vmatprep.mubr.bf16.mxu0 0
  %872 = vmatmul.mubr.bf16.gmra.mrb[0].mxu0 %v787
  %v873 = vpop.f32.mrb[0].mxu0
  %v874 = vadd.f32 0.0, %v873
  %v875 = vpop.f32.mrb[0].mxu0
  %v876 = vpop.f32.mrb[0].mxu0
  %v877 = vadd.f32 0.0, %v876
  %v878 = vpop.f32.mrb[0].mxu0
  %879 = vmatprep.mubr.bf16.mxu0 0
  %880 = vmatmul.mubr.bf16.gmra.mrb[0].mxu0 %v788
  %v881 = vpop.f32.mrb[0].mxu0
  %v882 = vadd.f32 0.0, %v881
  %v883 = vpop.f32.mrb[0].mxu0
  %v884 = vpop.f32.mrb[0].mxu0
  %v885 = vadd.f32 0.0, %v884
  %v886 = vpop.f32.mrb[0].mxu0
  %887 = vmatprep.mubr.bf16.mxu0 0
  %888 = vmatmul.mubr.bf16.gmra.mrb[0].mxu0 %v789
  %v889 = vpop.f32.mrb[0].mxu0
  %v890 = vadd.f32 0.0, %v889
  %v891 = vpop.f32.mrb[0].mxu0
  %v892 = vpop.f32.mrb[0].mxu0
  %v893 = vadd.f32 0.0, %v892
  %v894 = vpop.f32.mrb[0].mxu0
  %895 = vdwg.mxu0
  %v896 = vpack.c.bf16 %v837, %v834
  %v897 = vpack.c.bf16 %v845, %v842
  %v898 = vpack.c.bf16 %v853, %v850
  %v899 = vpack.c.bf16 %v861, %v858
  %v900 = vpack.c.bf16 %v869, %v866
  %v901 = vpack.c.bf16 %v877, %v874
  %v902 = vpack.c.bf16 %v885, %v882
  %v903 = vpack.c.bf16 %v893, %v890
  %v904 = vld [vmem:[%s3 + $0x2] sm:$0x1]
  %v905 = vlaneseq
  %v906 = vshrl.u32 %v905, 7
  %v907 = vsub.s32 0, %v906
  %v908 = vrot.slane %v904, %v907
  %909 = vmatprep.subr.bf16.mxu0 0
  %910 = vmatpush1.bf16.msra.mxu0 %v896
  %911 = vmatprep.subr.bf16.mxu0 0
  %912 = vmatpush1.bf16.msra.mxu0 %v897
  %913 = vmatprep.subr.bf16.mxu0 0
  %914 = vmatpush1.bf16.msra.mxu0 %v898
  %915 = vmatprep.subr.bf16.mxu0 0
  %916 = vmatpush1.bf16.msra.mxu0 %v899
  %917 = vmatprep.subr.bf16.mxu0 0
  %918 = vmatpush1.bf16.msra.mxu0 %v900
  %919 = vmatprep.subr.bf16.mxu0 0
  %920 = vmatpush1.bf16.msra.mxu0 %v901
  %921 = vmatprep.subr.bf16.mxu0 0
  %922 = vmatpush1.bf16.msra.mxu0 %v902
  %923 = vmatprep.subr.bf16.mxu0 0
  %924 = vmatpush1.bf16.msra.mxu0 %v903
  %925 = vmatprep.subr.bf16.mxu0 0
  %926 = vmatpush1.bf16.msra.mxu0 0
  %927 = vmatprep.subr.bf16.mxu0 0
  %928 = vmatpush1.bf16.msra.mxu0 0
  %929 = vmatprep.subr.bf16.mxu0 0
  %930 = vmatpush1.bf16.msra.mxu0 0
  %931 = vmatprep.subr.bf16.mxu0 0
  %932 = vmatpush1.bf16.msra.mxu0 0
  %933 = vmatprep.subr.bf16.mxu0 0
  %934 = vmatpush1.bf16.msra.mxu0 0
  %935 = vmatprep.subr.bf16.mxu0 0
  %936 = vmatpush1.bf16.msra.mxu0 0
  %937 = vmatprep.subr.bf16.mxu0 0
  %938 = vmatpush1.bf16.msra.mxu0 0
  %939 = vmatprep.subr.bf16.mxu0 0
  %940 = vmatpush1.bf16.msra.mxu0 0
  %941 = vmatprep.mubr.bf16.mxu0 0
  %942 = vmatmul.mubr.bf16.gmra.mrb[0].mxu0 %v239
  %v943 = vpop.f32.mrb[0].mxu0
  %v944 = vadd.f32 %v908, %v943
  %v945 = vpop.f32.mrb[0].mxu0
  %v946 = vpop.f32.mrb[0].mxu0
  %v947 = vadd.f32 %v908, %v946
  %v948 = vpop.f32.mrb[0].mxu0
  %949 = vmatprep.mubr.bf16.mxu0 0
  %950 = vmatmul.mubr.bf16.gmra.mrb[0].mxu0 %v240
  %v951 = vpop.f32.mrb[0].mxu0
  %v952 = vpop.f32.mrb[0].mxu0
  %v953 = vpop.f32.mrb[0].mxu0
  %v954 = vpop.f32.mrb[0].mxu0
  %955 = vmatprep.mubr.bf16.mxu0 0
  %956 = vmatmul.mubr.bf16.gmra.mrb[0].mxu0 %v241
  %v957 = vpop.f32.mrb[0].mxu0
  %v958 = vpop.f32.mrb[0].mxu0
  %v959 = vpop.f32.mrb[0].mxu0
  %v960 = vpop.f32.mrb[0].mxu0
  %961 = vmatprep.mubr.bf16.mxu0 0
  %962 = vmatmul.mubr.bf16.gmra.mrb[0].mxu0 %v242
  %v963 = vpop.f32.mrb[0].mxu0
  %v964 = vpop.f32.mrb[0].mxu0
  %v965 = vpop.f32.mrb[0].mxu0
  %v966 = vpop.f32.mrb[0].mxu0
  %967 = vmatprep.mubr.bf16.mxu0 0
  %968 = vmatmul.mubr.bf16.gmra.mrb[0].mxu0 %v243
  %v969 = vpop.f32.mrb[0].mxu0
  %v970 = vpop.f32.mrb[0].mxu0
  %v971 = vpop.f32.mrb[0].mxu0
  %v972 = vpop.f32.mrb[0].mxu0
  %973 = vmatprep.mubr.bf16.mxu0 0
  %974 = vmatmul.mubr.bf16.gmra.mrb[0].mxu0 %v244
  %v975 = vpop.f32.mrb[0].mxu0
  %v976 = vpop.f32.mrb[0].mxu0
  %v977 = vpop.f32.mrb[0].mxu0
  %v978 = vpop.f32.mrb[0].mxu0
  %979 = vmatprep.mubr.bf16.mxu0 0
  %980 = vmatmul.mubr.bf16.gmra.mrb[0].mxu0 %v245
  %v981 = vpop.f32.mrb[0].mxu0
  %v982 = vpop.f32.mrb[0].mxu0
  %v983 = vpop.f32.mrb[0].mxu0
  %v984 = vpop.f32.mrb[0].mxu0
  %985 = vmatprep.mubr.bf16.mxu0 0
  %986 = vmatmul.mubr.bf16.gmra.mrb[0].mxu0 %v246
  %v987 = vpop.f32.mrb[0].mxu0
  %v988 = vpop.f32.mrb[0].mxu0
  %v989 = vpop.f32.mrb[0].mxu0
  %v990 = vpop.f32.mrb[0].mxu0
  %991 = vdwg.mxu0
  %v992 = vmax.f32 %v944, 0.0
  %v993 = vmax.f32 %v947, 0.0
  %s994 = sld [smem:[#allocation6]]
  %v995 = vlaneseq
  %v996 = vshrl.u32 %v995, 7
  %v997 = vstv %s994
  %vm998 = vcmp.lt.s32.totalorder %v996, %v997
  %v999 = vsel %vm998, %v992, -1e+30
  %v1000 = vrot.slane %v999, 4
  %v1001 = vmax.f32 %v999, %v1000
  %v1002 = vrot.slane %v1001, 2
  %v1003 = vmax.f32 %v1001, %v1002
  %v1004 = vrot.slane %v1003, 1
  %v1005 = vmax.f32 %v1003, %v1004
  %s1006 = scvt.s32.f32 %s994
  %s1007 = smax.f32 %s1006, 1.0
  %v1008 = vstv %s1007
  %v1009 = vrcp.pop %v1008
  %s1010 = vtos %v1009
  %v1011 = vsel %vm998, %v992, 0.0
  %v1012 = vrot.slane %v1011, 4
  %v1013 = vadd.f32 %v1011, %v1012
  %v1014 = vrot.slane %v1013, 2
  %v1015 = vadd.f32 %v1013, %v1014
  %v1016 = vrot.slane %v1015, 1
  %v1017 = vadd.f32 %v1015, %v1016
  %v1018 = vstv %s1010
  %v1019 = vmul.f32 %v1017, %v1018
  %s1020 = sld [smem:[#allocation6 + $0x1]]
  %v1021 = vstv %s1020
  %vm1022 = vcmp.lt.s32.totalorder %v996, %v1021
  %v1023 = vsel %vm1022, %v993, -1e+30
  %v1024 = vrot.slane %v1023, 4
  %v1025 = vmax.f32 %v1023, %v1024
  %v1026 = vrot.slane %v1025, 2
  %v1027 = vmax.f32 %v1025, %v1026
  %v1028 = vrot.slane %v1027, 1
  %v1029 = vmax.f32 %v1027, %v1028
  %s1030 = scvt.s32.f32 %s1020
  %s1031 = smax.f32 %s1030, 1.0
  %v1032 = vstv %s1031
  %v1033 = vrcp.pop %v1032
  %s1034 = vtos %v1033
  %v1035 = vsel %vm1022, %v993, 0.0
  %v1036 = vrot.slane %v1035, 4
  %v1037 = vadd.f32 %v1035, %v1036
  %v1038 = vrot.slane %v1037, 2
  %v1039 = vadd.f32 %v1037, %v1038
  %v1040 = vrot.slane %v1039, 1
  %v1041 = vadd.f32 %v1039, %v1040
  %v1042 = vstv %s1034
  %v1043 = vmul.f32 %v1041, %v1042
  %vm1044 = vcmask 1040384
  %v1045 = vsel %vm1044, %v1005, %v1029
  %vm1046 = vcmask 1041408
  %v1047 = vsel %vm1046, %v1045, 0.0
  %v1048 = vsel %vm1044, %v1019, %v1043
  %v1049 = vsel %vm1046, %v1048, 0.0
  %v1050 = vpack.c.bf16 %v1047, %v1047
  %s1051 = scalar_lea.vmem [#allocation3], 192
  %v1052 = vld [vmem:[%s1051] sm:$0xff]
  %v1053 = vld [vmem:[%s1051 + $0x8] sm:$0xff]
  %v1054 = vld [vmem:[%s1051 + $0x10] sm:$0xff]
  %v1055 = vld [vmem:[%s1051 + $0x18] sm:$0xff]
  %v1056 = vld [vmem:[%s1051 + $0x20] sm:$0xff]
  %v1057 = vld [vmem:[%s1051 + $0x28] sm:$0xff]
  %v1058 = vld [vmem:[%s1051 + $0x30] sm:$0xff]
  %v1059 = vld [vmem:[%s1051 + $0x38] sm:$0xff]
  %v1060 = vpack.c.bf16 %v1049, %v1049
  %s1061 = scalar_lea.vmem [#allocation3], 256
  %v1062 = vld [vmem:[%s1061] sm:$0xff]
  %v1063 = vld [vmem:[%s1061 + $0x8] sm:$0xff]
  %v1064 = vld [vmem:[%s1061 + $0x10] sm:$0xff]
  %v1065 = vld [vmem:[%s1061 + $0x18] sm:$0xff]
  %v1066 = vld [vmem:[%s1061 + $0x20] sm:$0xff]
  %v1067 = vld [vmem:[%s1061 + $0x28] sm:$0xff]
  %v1068 = vld [vmem:[%s1061 + $0x30] sm:$0xff]
  %v1069 = vld [vmem:[%s1061 + $0x38] sm:$0xff]
  %1070 = vmatprep.subr.bf16.mxu0 0
  %1071 = vmatpush1.bf16.msra.mxu0 %v1062
  %1072 = vmatprep.subr.bf16.mxu0 0
  %1073 = vmatpush1.bf16.msra.mxu0 %v1063
  %1074 = vmatprep.subr.bf16.mxu0 0
  %1075 = vmatpush1.bf16.msra.mxu0 %v1064
  %1076 = vmatprep.subr.bf16.mxu0 0
  %1077 = vmatpush1.bf16.msra.mxu0 %v1065
  %1078 = vmatprep.subr.bf16.mxu0 0
  %1079 = vmatpush1.bf16.msra.mxu0 %v1066
  %1080 = vmatprep.subr.bf16.mxu0 0
  %1081 = vmatpush1.bf16.msra.mxu0 %v1067
  %1082 = vmatprep.subr.bf16.mxu0 0
  %1083 = vmatpush1.bf16.msra.mxu0 %v1068
  %1084 = vmatprep.subr.bf16.mxu0 0
  %1085 = vmatpush1.bf16.msra.mxu0 %v1069
  %1086 = vmatprep.subr.bf16.mxu0 0
  %1087 = vmatpush1.bf16.msra.mxu0 0
  %1088 = vmatprep.subr.bf16.mxu0 0
  %1089 = vmatpush1.bf16.msra.mxu0 0
  %1090 = vmatprep.subr.bf16.mxu0 0
  %1091 = vmatpush1.bf16.msra.mxu0 0
  %1092 = vmatprep.subr.bf16.mxu0 0
  %1093 = vmatpush1.bf16.msra.mxu0 0
  %1094 = vmatprep.subr.bf16.mxu0 0
  %1095 = vmatpush1.bf16.msra.mxu0 0
  %1096 = vmatprep.subr.bf16.mxu0 0
  %1097 = vmatpush1.bf16.msra.mxu0 0
  %1098 = vmatprep.subr.bf16.mxu0 0
  %1099 = vmatpush1.bf16.msra.mxu0 0
  %1100 = vmatprep.subr.bf16.mxu0 0
  %1101 = vmatpush1.bf16.msra.mxu0 0
  %1102 = vmatprep.mubr.bf16.mxu0 0
  %1103 = vmatmul.mubr.bf16.gmra.mrb[0].mxu0 %v1060
  %v1104 = vpop.f32.mrb[0].mxu0
  %v1105 = vadd.f32 0.0, %v1104
  %v1106 = vpop.f32.mrb[0].mxu0
  %v1107 = vpop.f32.mrb[0].mxu0
  %v1108 = vpop.f32.mrb[0].mxu0
  %1109 = vdwg.mxu0
  %1110 = vmatprep.subr.bf16.mxu0 0
  %1111 = vmatpush1.bf16.msra.mxu0 %v1052
  %1112 = vmatprep.subr.bf16.mxu0 0
  %1113 = vmatpush1.bf16.msra.mxu0 %v1053
  %1114 = vmatprep.subr.bf16.mxu0 0
  %1115 = vmatpush1.bf16.msra.mxu0 %v1054
  %1116 = vmatprep.subr.bf16.mxu0 0
  %1117 = vmatpush1.bf16.msra.mxu0 %v1055
  %1118 = vmatprep.subr.bf16.mxu0 0
  %1119 = vmatpush1.bf16.msra.mxu0 %v1056
  %1120 = vmatprep.subr.bf16.mxu0 0
  %1121 = vmatpush1.bf16.msra.mxu0 %v1057
  %1122 = vmatprep.subr.bf16.mxu0 0
  %1123 = vmatpush1.bf16.msra.mxu0 %v1058
  %1124 = vmatprep.subr.bf16.mxu0 0
  %1125 = vmatpush1.bf16.msra.mxu0 %v1059
  %1126 = vmatprep.subr.bf16.mxu0 0
  %1127 = vmatpush1.bf16.msra.mxu0 0
  %1128 = vmatprep.subr.bf16.mxu0 0
  %1129 = vmatpush1.bf16.msra.mxu0 0
  %1130 = vmatprep.subr.bf16.mxu0 0
  %1131 = vmatpush1.bf16.msra.mxu0 0
  %1132 = vmatprep.subr.bf16.mxu0 0
  %1133 = vmatpush1.bf16.msra.mxu0 0
  %1134 = vmatprep.subr.bf16.mxu0 0
  %1135 = vmatpush1.bf16.msra.mxu0 0
  %1136 = vmatprep.subr.bf16.mxu0 0
  %1137 = vmatpush1.bf16.msra.mxu0 0
  %1138 = vmatprep.subr.bf16.mxu0 0
  %1139 = vmatpush1.bf16.msra.mxu0 0
  %1140 = vmatprep.subr.bf16.mxu0 0
  %1141 = vmatpush1.bf16.msra.mxu0 0
  %1142 = vmatprep.mubr.bf16.mxu0 0
  %1143 = vmatmul.mubr.bf16.gmra.mrb[0].mxu0 %v1050
  %v1144 = vpop.f32.mrb[0].mxu0
  %v1145 = vadd.f32 %v1105, %v1144
  %v1146 = vpop.f32.mrb[0].mxu0
  %v1147 = vpop.f32.mrb[0].mxu0
  %v1148 = vpop.f32.mrb[0].mxu0
  %1149 = vdwg.mxu0
  %v1150 = vld [vmem:[%s3 + $0x3] sm:$0x1]
  %v1151 = vlaneseq
  %v1152 = vshrl.u32 %v1151, 7
  %v1153 = vsub.s32 0, %v1152
  %v1154 = vrot.slane %v1150, %v1153
  %v1155 = vadd.f32 %v1145, %v1154
  %v1156 = vmax.f32 %v1155, 0.0
  %v1157 = vpack.c.bf16 %v1156, %v1156
  %s1158 = scalar_lea.vmem [#allocation3], 320
  %v1159 = vld [vmem:[%s1158] sm:$0xff]
  %v1160 = vld [vmem:[%s1158 + $0x8] sm:$0xff]
  %v1161 = vld [vmem:[%s1158 + $0x10] sm:$0xff]
  %v1162 = vld [vmem:[%s1158 + $0x18] sm:$0xff]
  %v1163 = vld [vmem:[%s1158 + $0x20] sm:$0xff]
  %v1164 = vld [vmem:[%s1158 + $0x28] sm:$0xff]
  %v1165 = vld [vmem:[%s1158 + $0x30] sm:$0xff]
  %v1166 = vld [vmem:[%s1158 + $0x38] sm:$0xff]
  %v1167 = vld [vmem:[%s3 + $0x4] sm:$0x1]
  %v1168 = vlaneseq
  %v1169 = vshrl.u32 %v1168, 7
  %v1170 = vsub.s32 0, %v1169
  %v1171 = vrot.slane %v1167, %v1170
  %1172 = vmatprep.subr.bf16.mxu0 0
  %1173 = vmatpush1.bf16.msra.mxu0 %v1159
  %1174 = vmatprep.subr.bf16.mxu0 0
  %1175 = vmatpush1.bf16.msra.mxu0 %v1160
  %1176 = vmatprep.subr.bf16.mxu0 0
  %1177 = vmatpush1.bf16.msra.mxu0 %v1161
  %1178 = vmatprep.subr.bf16.mxu0 0
  %1179 = vmatpush1.bf16.msra.mxu0 %v1162
  %1180 = vmatprep.subr.bf16.mxu0 0
  %1181 = vmatpush1.bf16.msra.mxu0 %v1163
  %1182 = vmatprep.subr.bf16.mxu0 0
  %1183 = vmatpush1.bf16.msra.mxu0 %v1164
  %1184 = vmatprep.subr.bf16.mxu0 0
  %1185 = vmatpush1.bf16.msra.mxu0 %v1165
  %1186 = vmatprep.subr.bf16.mxu0 0
  %1187 = vmatpush1.bf16.msra.mxu0 %v1166
  %1188 = vmatprep.subr.bf16.mxu0 0
  %1189 = vmatpush1.bf16.msra.mxu0 0
  %1190 = vmatprep.subr.bf16.mxu0 0
  %1191 = vmatpush1.bf16.msra.mxu0 0
  %1192 = vmatprep.subr.bf16.mxu0 0
  %1193 = vmatpush1.bf16.msra.mxu0 0
  %1194 = vmatprep.subr.bf16.mxu0 0
  %1195 = vmatpush1.bf16.msra.mxu0 0
  %1196 = vmatprep.subr.bf16.mxu0 0
  %1197 = vmatpush1.bf16.msra.mxu0 0
  %1198 = vmatprep.subr.bf16.mxu0 0
  %1199 = vmatpush1.bf16.msra.mxu0 0
  %1200 = vmatprep.subr.bf16.mxu0 0
  %1201 = vmatpush1.bf16.msra.mxu0 0
  %1202 = vmatprep.subr.bf16.mxu0 0
  %1203 = vmatpush1.bf16.msra.mxu0 0
  %1204 = vmatprep.mubr.bf16.mxu0 0
  %1205 = vmatmul.mubr.bf16.gmra.mrb[0].mxu0 %v1157
  %v1206 = vpop.f32.mrb[0].mxu0
  %v1207 = vadd.f32 %v1171, %v1206
  %v1208 = vpop.f32.mrb[0].mxu0
  %v1209 = vpop.f32.mrb[0].mxu0
  %v1210 = vpop.f32.mrb[0].mxu0
  %1211 = vdwg.mxu0
  %v1212 = vmax.f32 %v1207, 0.0
  %v1213 = vpack.c.bf16 %v1212, %v1212
  %s1214 = scalar_lea.vmem [#allocation3], 384
  %v1215 = vld [vmem:[%s1214] sm:$0xff]
  %v1216 = vld [vmem:[%s1214 + $0x8] sm:$0xff]
  %v1217 = vld [vmem:[%s1214 + $0x10] sm:$0xff]
  %v1218 = vld [vmem:[%s1214 + $0x18] sm:$0xff]
  %v1219 = vld [vmem:[%s1214 + $0x20] sm:$0xff]
  %v1220 = vld [vmem:[%s1214 + $0x28] sm:$0xff]
  %v1221 = vld [vmem:[%s1214 + $0x30] sm:$0xff]
  %v1222 = vld [vmem:[%s1214 + $0x38] sm:$0xff]
  %v1223 = vld [vmem:[%s3 + $0x5] sm:$0x1]
  %v1224 = vlaneseq
  %v1225 = vshrl.u32 %v1224, 7
  %v1226 = vsub.s32 0, %v1225
  %v1227 = vrot.slane %v1223, %v1226
  %1228 = vmatprep.subr.bf16.mxu0 0
  %1229 = vmatpush1.bf16.msra.mxu0 %v1215
  %1230 = vmatprep.subr.bf16.mxu0 0
  %1231 = vmatpush1.bf16.msra.mxu0 %v1216
  %1232 = vmatprep.subr.bf16.mxu0 0
  %1233 = vmatpush1.bf16.msra.mxu0 %v1217
  %1234 = vmatprep.subr.bf16.mxu0 0
  %1235 = vmatpush1.bf16.msra.mxu0 %v1218
  %1236 = vmatprep.subr.bf16.mxu0 0
  %1237 = vmatpush1.bf16.msra.mxu0 %v1219
  %1238 = vmatprep.subr.bf16.mxu0 0
  %1239 = vmatpush1.bf16.msra.mxu0 %v1220
  %1240 = vmatprep.subr.bf16.mxu0 0
  %1241 = vmatpush1.bf16.msra.mxu0 %v1221
  %1242 = vmatprep.subr.bf16.mxu0 0
  %1243 = vmatpush1.bf16.msra.mxu0 %v1222
  %1244 = vmatprep.subr.bf16.mxu0 0
  %1245 = vmatpush1.bf16.msra.mxu0 0
  %1246 = vmatprep.subr.bf16.mxu0 0
  %1247 = vmatpush1.bf16.msra.mxu0 0
  %1248 = vmatprep.subr.bf16.mxu0 0
  %1249 = vmatpush1.bf16.msra.mxu0 0
  %1250 = vmatprep.subr.bf16.mxu0 0
  %1251 = vmatpush1.bf16.msra.mxu0 0
  %1252 = vmatprep.subr.bf16.mxu0 0
  %1253 = vmatpush1.bf16.msra.mxu0 0
  %1254 = vmatprep.subr.bf16.mxu0 0
  %1255 = vmatpush1.bf16.msra.mxu0 0
  %1256 = vmatprep.subr.bf16.mxu0 0
  %1257 = vmatpush1.bf16.msra.mxu0 0
  %1258 = vmatprep.subr.bf16.mxu0 0
  %1259 = vmatpush1.bf16.msra.mxu0 0
  %1260 = vmatprep.mubr.bf16.mxu0 0
  %1261 = vmatmul.mubr.bf16.gmra.mrb[0].mxu0 %v1213
  %v1262 = vpop.f32.mrb[0].mxu0
  %v1263 = vadd.f32 %v1227, %v1262
  %v1264 = vpop.f32.mrb[0].mxu0
  %v1265 = vpop.f32.mrb[0].mxu0
  %v1266 = vpop.f32.mrb[0].mxu0
  %1267 = vdwg.mxu0
  %v1268 = vlaneseq
  %v1269 = vand.u32 %v1268, 127
  %vm1270 = vcmp.lt.s32.totalorder %v1269, 4
  %v1271 = vsel %vm1270, %v1263, -1e+30
  %1272 = vmax.xlane.f32.xlu0 %v1271
  %v1273 = vpop.xlane.xlu0 %1272
  %v1274 = vsub.f32 %v1271, %v1273
  %v1275 = vmul.f32 %v1274, 1.442695
  %v1276 = vpow.pop %v1275
  %1277 = vadd.xlane.f32.xlu0 %v1276
  %v1278 = vpop.xlane.xlu0 %1277
  %v1279 = vlog2.pop %v1278
  %v1280 = vmul.f32 %v1279, 0.6931472
  %v1281 = vsub.f32 %v1274, %v1280
  %1282 = vst [vmem:[%s5] sm:$0xff] %v1281
  // Predicated region
  $region78: #{gcn_net_forward.1} parent=0 // pred_check
    _
  $region79: #{gcn_net_forward.1} parent=0 // pred_check_branch
    %1284 = sbr.rel (0) target = $region81
  $region80: #{gcn_net_forward.1} parent=0 // pred_region
    _
  $region81: #{gcn_net_forward.1} parent=0 // pred_fallthru
    _
  // Predicated region
  $region82: #{gcn_net_forward.1} parent=0 // pred_check
    _
  $region83: #{gcn_net_forward.1} parent=0 // pred_check_branch
    %1286 = sbr.rel (0) target = $region85
  $region84: #{gcn_net_forward.1} parent=0 // pred_region
    _
  $region85: #{gcn_net_forward.1} parent=0 // pred_fallthru
    _
  %1287 = vsyncmov [#allocation4]
  %s1288 = vpop.sfrf %1287
  %p1289 = scmp.eq.s32.totalorder %s1288, 0
  %p1290 = pneg %p1289
  %1292 = shalt.err (%p1290)
  %s1293 = scalar_lea.sflag [#allocation4], 1
  %1294 = vsyncmov %s1293
  %s1295 = vpop.sfrf %1294
  %p1296 = scmp.eq.s32.totalorder %s1295, 0
  %p1297 = pneg %p1296
  %1299 = shalt.err (%p1297)

</llo_original>
